<compile_context>
chip_gen: v7x
topology: tpu7x:2x2x1
jax: 0.10.0
libtpu: 0.0.40
codegen_flags: <defaults>
</compile_context>

<pallas_src>
import functools

import jax
import jax.numpy as jnp
from jax import lax
from jax.experimental import pallas as pl
from jax.experimental.pallas import tpu as pltpu

_MAX_LABEL = 70  # valid labels are [0, 70], hard-coded in the PyTorch module


def _ce_sum_kernel(pred_ref, tgt_ref, sum_ref, cnt_ref, acc_ref, cnt_acc_ref, *, hw):
    """One (image n, pixel-shard s, pixel-tile p) grid step.

    pred_ref    : (1, C, TP) logits tile (native dtype) — classes on sublanes
    tgt_ref     : (1, 1, TP) int32 labels tile
    sum_ref     : (1, 1, 1, 1) CE sum for (n, s)        (resident across p)
    cnt_ref     : (1, 1, 1, 1) valid-pixel count        (resident across p)
    acc_ref     : (1, TP) f32 per-lane CE accumulator   (scratch)
    cnt_acc_ref : (1, TP) f32 per-lane count accumulator(scratch)
    """
    s = pl.program_id(1)
    p = pl.program_id(2)
    num_p = pl.num_programs(2)

    @pl.when(p == 0)
    def _():
        acc_ref[...] = jnp.zeros_like(acc_ref)
        cnt_acc_ref[...] = jnp.zeros_like(cnt_acc_ref)

    x = pred_ref[0]                              # (C, TP), native dtype (f32/bf16)
    t = tgt_ref[0]                               # (1, TP) int32
    C, TP = x.shape

    # Combined valid mask at (1, TP): label in [0, 70] AND lane inside the
    # (possibly ragged) last tile.  OOB lanes hold stale data but are always
    # masked here; TPU select does not propagate NaN/Inf from the dead branch.
    tile = s * num_p + p
    gidx = tile * TP + lax.broadcasted_iota(jnp.int32, (1, TP), 1)      # (1, TP)
    valid = jnp.logical_and(jnp.logical_and(t >= 0, t <= _MAX_LABEL),
                            gidx < hw)                                   # (1, TP)

    # Numerically stable log-sum-exp over the class (sublane) axis.
    m = jnp.max(x, axis=0, keepdims=True)                                # (1, TP)
    e = jnp.exp((x - m).astype(jnp.float32))                             # (C, TP) f32

    # One-hot target select, no per-class mask AND (out-of-range labels never
    # match col; stale OOB lanes are killed by `valid` below).
    col = lax.broadcasted_iota(jnp.int32, (C, TP), 0)                    # (C, TP)
    sel = jnp.where(col == t, x, 0.0)                                    # (C, TP) native

    # Class-axis reductions on the otherwise-idle MXU: ones(8,C) @ (C,TP).
    # HIGHEST precision keeps the f32 path exact enough vs a plain f32 sum.
    ones_f = jnp.ones((8, C), jnp.float32)
    ones_x = jnp.ones((8, C), x.dtype)
    sum_e = jnp.dot(ones_f, e, precision=lax.Precision.HIGHEST,
                    preferred_element_type=jnp.float32)[0:1]             # (1, TP)
    picked = jnp.dot(ones_x, sel, precision=lax.Precision.HIGHEST,
                     preferred_element_type=jnp.float32)[0:1]            # (1, TP)

    lse = m.astype(jnp.float32) + jnp.log(sum_e)                         # (1, TP)
    ce = jnp.where(valid, lse - picked, 0.0)                             # (1, TP)

    # Lane-wide accumulation; cross-lane reduce + store only on the last tile.
    acc_ref[...] += ce
    cnt_acc_ref[...] += valid.astype(jnp.float32)

    @pl.when(p == num_p - 1)
    def _():
        sum_ref[...] = jnp.full((1, 1, 1, 1), jnp.sum(acc_ref[...]), jnp.float32)
        cnt_ref[...] = jnp.full((1, 1, 1, 1), jnp.sum(cnt_acc_ref[...]), jnp.float32)


@functools.partial(jax.jit, static_argnames=("tp",))
def d_ce_loss(pred, target, tp=8192):
    """pred: (N, C, H, W) float, target: (N, H, W) int. Returns scalar f32 loss."""
    N, C, H, W = pred.shape
    HW = H * W

    # Free reshapes only: pred stays in NCHW order (no transpose / dtype copy
    # in HBM); target is tiny, so its int32 cast is negligible.
    pred3 = pred.reshape(N, C, HW)
    tgt3 = target.reshape(N, 1, HW).astype(jnp.int32)

    # Lane-dim tile: multiple of 128 or the full dim.  TP=8192 amortizes the
    # per-step overhead while staying well under every generation's VMEM.
    TP = HW if HW <= tp else tp
    n_tiles = pl.cdiv(HW, TP)

    # Extra parallel pixel-shard axis for dual-TensorCore chips (v7x); only
    # used when the tile count splits evenly so no fully-OOB blocks exist.
    S = 2 if (n_tiles % 2 == 0) else 1
    tiles_per_shard = n_tiles // S

    pix_map = lambda n, s, p, _tps=tiles_per_shard: (n, 0, s * _tps + p)

    sums, cnts = pl.pallas_call(
        functools.partial(_ce_sum_kernel, hw=HW),
        out_shape=(jax.ShapeDtypeStruct((N, S, 1, 1), jnp.float32),
                   jax.ShapeDtypeStruct((N, S, 1, 1), jnp.float32)),
        grid=(N, S, tiles_per_shard),
        in_specs=[
            pl.BlockSpec((1, C, TP), pix_map),   # logits tile
            pl.BlockSpec((1, 1, TP), pix_map),   # labels tile
        ],
        out_specs=(
            pl.BlockSpec((1, 1, 1, 1), lambda n, s, p: (n, s, 0, 0)),   # CE sum
            pl.BlockSpec((1, 1, 1, 1), lambda n, s, p: (n, s, 0, 0)),   # valid count
        ),
        scratch_shapes=[
            pltpu.VMEM((1, TP), jnp.float32),    # per-lane CE accumulator
            pltpu.VMEM((1, TP), jnp.float32),    # per-lane count accumulator
        ],
        compiler_params=pltpu.CompilerParams(
            dimension_semantics=("parallel", "parallel", "arbitrary"),
            vmem_limit_bytes=32 * 1024 * 1024),  # keeps TP=8192 safe on v5e
    )(pred3, tgt3)

    # Mean over masked pixels (count == 0 -> NaN, matching F.cross_entropy on
    # an empty selection with reduction='mean').
    return jnp.sum(sums) / jnp.sum(cnts)


def _ref_loss(pred, target):
    """Pure-JAX reference for sanity checking."""
    N, C, H, W = pred.shape
    pf = jnp.transpose(pred, (0, 2, 3, 1)).reshape(-1, C).astype(jnp.float32)
    tf = target.reshape(-1).astype(jnp.int32)
    msk = jnp.logical_and(tf >= 0, tf <= _MAX_LABEL)
    lse = jax.nn.logsumexp(pf, axis=-1)
    picked = jnp.take_along_axis(pf, jnp.where(msk, tf, 0)[:, None], axis=-1)[:, 0]
    ce = lse - picked
    return jnp.sum(jnp.where(msk, ce, 0.0)) / jnp.sum(msk.astype(jnp.float32))


if __name__ == "__main__":
    # Small deterministic example: N=2, C=71 classes (labels 0..70), 16x16 maps.
    key = jax.random.PRNGKey(0)
    k_pred, k_tgt = jax.random.split(key)
    N, C, H, W = 2, 71, 16, 16
    pred = jax.random.normal(k_pred, (N, C, H, W), dtype=jnp.float32)
    # Labels in [-5, 80]: some out of the valid [0, 70] range to exercise masking.
    target = jax.random.randint(k_tgt, (N, H, W), -5, 81, dtype=jnp.int32)

    loss = d_ce_loss(pred, target)
    jax.block_until_ready(loss)

    ref = _ref_loss(pred, target)
    assert jnp.allclose(loss, ref, rtol=1e-5, atol=1e-5), (loss, ref)
    print("KERNEL_OK")
</pallas_src>

<mosaic_0001>
module attributes {stable_mosaic.version = 11 : i64} {
  func.func @_ce_sum_kernel(%arg0: i32, %arg1: i32, %arg2: i32, %arg3: memref<1x71x256xf32, #tpu.memory_space<vmem>>, %arg4: memref<1x1x256xi32, #tpu.memory_space<vmem>>, %arg5: memref<1x1x1x1xf32, #tpu.memory_space<vmem>>, %arg6: memref<1x1x1x1xf32, #tpu.memory_space<vmem>>, %arg7: memref<1x256xf32, #tpu.memory_space<vmem>>, %arg8: memref<1x256xf32, #tpu.memory_space<vmem>>) attributes {dimension_semantics = [#tpu.dimension_semantics<parallel>, #tpu.dimension_semantics<parallel>, #tpu.dimension_semantics<arbitrary>], iteration_bounds = array<i64: 2, 1, 1>, scalar_prefetch = 0 : i64, scratch_operands = 2 : i64, tpu.core_type = #tpu.core_type<tc>, window_params = [{transform_indices = @transform_0, window_bounds = array<i64: 1, 71, 256>}, {transform_indices = @transform_1, window_bounds = array<i64: 1, 1, 256>}, {transform_indices = @transform_2, window_bounds = array<i64: 1, 1, 1, 1>}, {transform_indices = @transform_3, window_bounds = array<i64: 1, 1, 1, 1>}]} {
    %c0_i32 = arith.constant 0 : i32
    %0 = arith.cmpi eq, %arg2, %c0_i32 : i32
    %1 = arith.extui %0 : i1 to i32
    %c0_i32_0 = arith.constant 0 : i32
    %2 = arith.cmpi ne, %1, %c0_i32_0 : i32
    scf.if %2 {
      %cst_24 = arith.constant 0.000000e+00 : f32
      %53 = vector.broadcast %cst_24 : f32 to vector<1x256xf32>
      %c0_25 = arith.constant 0 : index
      %c0_26 = arith.constant 0 : index
      %54 = vector.load %arg7[%c0_25, %c0_26] : memref<1x256xf32, #tpu.memory_space<vmem>>, vector<1x256xf32>
      tpu.vector_store %arg7[%c0_25, %c0_26], %53 {strides = array<i32>} : memref<1x256xf32, #tpu.memory_space<vmem>>, vector<1x256xf32>,
      %cst_27 = arith.constant 0.000000e+00 : f32
      %55 = vector.broadcast %cst_27 : f32 to vector<1x256xf32>
      %c0_28 = arith.constant 0 : index
      %c0_29 = arith.constant 0 : index
      %56 = vector.load %arg8[%c0_28, %c0_29] : memref<1x256xf32, #tpu.memory_space<vmem>>, vector<1x256xf32>
      tpu.vector_store %arg8[%c0_28, %c0_29], %55 {strides = array<i32>} : memref<1x256xf32, #tpu.memory_space<vmem>>, vector<1x256xf32>,
    } else {
    }
    %c0 = arith.constant 0 : index
    %c0_1 = arith.constant 0 : index
    %c0_2 = arith.constant 0 : index
    %3 = vector.load %arg3[%c0, %c0_1, %c0_2] : memref<1x71x256xf32, #tpu.memory_space<vmem>>, vector<1x71x256xf32>
    %4 = vector.shape_cast %3 : vector<1x71x256xf32> to vector<71x256xf32>
    %c0_3 = arith.constant 0 : index
    %c0_4 = arith.constant 0 : index
    %c0_5 = arith.constant 0 : index
    %5 = vector.load %arg4[%c0_3, %c0_4, %c0_5] : memref<1x1x256xi32, #tpu.memory_space<vmem>>, vector<1x1x256xi32>
    %6 = vector.shape_cast %5 : vector<1x1x256xi32> to vector<1x256xi32>
    %c1_i32 = arith.constant 1 : i32
    %7 = arith.muli %arg1, %c1_i32 : i32
    %8 = arith.addi %7, %arg2 : i32
    %c256_i32 = arith.constant 256 : i32
    %9 = arith.muli %8, %c256_i32 : i32
    %10 = tpu.iota {dimensions = array<i32: 1>} : vector<1x256xi32>
    %11 = vector.broadcast %9 : i32 to vector<1x256xi32>
    %12 = arith.addi %11, %10 : vector<1x256xi32>
    %c0_i32_6 = arith.constant 0 : i32
    %13 = vector.broadcast %c0_i32_6 : i32 to vector<1x256xi32>
    %14 = arith.cmpi sge, %6, %13 : vector<1x256xi32>
    %c70_i32 = arith.constant 70 : i32
    %15 = vector.broadcast %c70_i32 : i32 to vector<1x256xi32>
    %16 = arith.cmpi sle, %6, %15 : vector<1x256xi32>
    %17 = arith.andi %14, %16 : vector<1x256xi1>
    %c256_i32_7 = arith.constant 256 : i32
    %18 = vector.broadcast %c256_i32_7 : i32 to vector<1x256xi32>
    %19 = arith.cmpi slt, %12, %18 : vector<1x256xi32>
    %20 = arith.andi %17, %19 : vector<1x256xi1>
    %cst = arith.constant dense<0xFF800000> : vector<256xf32>
    %21 = vector.multi_reduction <maximumf>, %4, %cst [0] : vector<71x256xf32> to vector<256xf32>
    %22 = vector.shape_cast %21 : vector<256xf32> to vector<1x256xf32>
    %23 = vector.broadcast %22 : vector<1x256xf32> to vector<71x256xf32>
    %24 = arith.subf %4, %23 : vector<71x256xf32>
    %25 = math.exp %24 : vector<71x256xf32>
    %26 = tpu.iota {dimensions = array<i32: 0>} : vector<71x256xi32>
    %27 = vector.broadcast %6 : vector<1x256xi32> to vector<71x256xi32>
    %28 = arith.cmpi eq, %26, %27 : vector<71x256xi32>
    %cst_8 = arith.constant 0.000000e+00 : f32
    %29 = vector.broadcast %cst_8 : f32 to vector<71x256xf32>
    %30 = arith.select %28, %4, %29 : vector<71x256xi1>, vector<71x256xf32>
    %cst_9 = arith.constant 1.000000e+00 : f32
    %31 = vector.broadcast %cst_9 : f32 to vector<8x71xf32>
    %cst_10 = arith.constant 1.000000e+00 : f32
    %32 = vector.broadcast %cst_10 : f32 to vector<8x71xf32>
    %cst_11 = arith.constant dense<0.000000e+00> : vector<8x256xf32>
    %33 = tpu.matmul %31, %25, %cst_11 {dimension_numbers = #tpu.dot_dimension_numbers<[1], [0], [0], [1], [0, 0, 1, 1], [], []>, precision = #tpu.contract_precision<fp32>} : vector<8x71xf32>, vector<71x256xf32>, vector<8x256xf32> -> vector<8x256xf32>
    %34 = vector.extract_strided_slice %33 {offsets = [0, 0], sizes = [1, 256], strides = [1, 1]} : vector<8x256xf32> to vector<1x256xf32>
    %cst_12 = arith.constant dense<0.000000e+00> : vector<8x256xf32>
    %35 = tpu.matmul %32, %30, %cst_12 {dimension_numbers = #tpu.dot_dimension_numbers<[1], [0], [0], [1], [0, 0, 1, 1], [], []>, precision = #tpu.contract_precision<fp32>} : vector<8x71xf32>, vector<71x256xf32>, vector<8x256xf32> -> vector<8x256xf32>
    %36 = vector.extract_strided_slice %35 {offsets = [0, 0], sizes = [1, 256], strides = [1, 1]} : vector<8x256xf32> to vector<1x256xf32>
    %37 = math.log %34 : vector<1x256xf32>
    %38 = arith.addf %22, %37 : vector<1x256xf32>
    %39 = arith.subf %38, %36 : vector<1x256xf32>
    %cst_13 = arith.constant 0.000000e+00 : f32
    %40 = vector.broadcast %cst_13 : f32 to vector<1x256xf32>
    %41 = arith.select %20, %39, %40 : vector<1x256xi1>, vector<1x256xf32>
    %c0_14 = arith.constant 0 : index
    %c0_15 = arith.constant 0 : index
    %42 = vector.load %arg7[%c0_14, %c0_15] : memref<1x256xf32, #tpu.memory_space<vmem>>, vector<1x256xf32>
    %43 = arith.addf %42, %41 : vector<1x256xf32>
    %c0_16 = arith.constant 0 : index
    %c0_17 = arith.constant 0 : index
    %44 = vector.load %arg7[%c0_16, %c0_17] : memref<1x256xf32, #tpu.memory_space<vmem>>, vector<1x256xf32>
    tpu.vector_store %arg7[%c0_16, %c0_17], %43 {strides = array<i32>} : memref<1x256xf32, #tpu.memory_space<vmem>>, vector<1x256xf32>,
    %c0_18 = arith.constant 0 : index
    %c0_19 = arith.constant 0 : index
    %45 = vector.load %arg8[%c0_18, %c0_19] : memref<1x256xf32, #tpu.memory_space<vmem>>, vector<1x256xf32>
    %46 = arith.extui %20 : vector<1x256xi1> to vector<1x256xi32>
    %47 = arith.sitofp %46 : vector<1x256xi32> to vector<1x256xf32>
    %48 = arith.addf %45, %47 : vector<1x256xf32>
    %c0_20 = arith.constant 0 : index
    %c0_21 = arith.constant 0 : index
    %49 = vector.load %arg8[%c0_20, %c0_21] : memref<1x256xf32, #tpu.memory_space<vmem>>, vector<1x256xf32>
    tpu.vector_store %arg8[%c0_20, %c0_21], %48 {strides = array<i32>} : memref<1x256xf32, #tpu.memory_space<vmem>>, vector<1x256xf32>,
    %c0_i32_22 = arith.constant 0 : i32
    %50 = arith.cmpi eq, %arg2, %c0_i32_22 : i32
    %51 = arith.extui %50 : i1 to i32
    %c0_i32_23 = arith.constant 0 : i32
    %52 = arith.cmpi ne, %51, %c0_i32_23 : i32
    scf.if %52 {
      %c0_24 = arith.constant 0 : index
      %c0_25 = arith.constant 0 : index
      %53 = vector.load %arg7[%c0_24, %c0_25] : memref<1x256xf32, #tpu.memory_space<vmem>>, vector<1x256xf32>
      %54 = vector.shape_cast %53 : vector<1x256xf32> to vector<1x1x256xf32>
      %cst_26 = arith.constant dense<0.000000e+00> : vector<1xf32>
      %55 = vector.multi_reduction <add>, %54, %cst_26 [1, 2] : vector<1x1x256xf32> to vector<1xf32>
      %56 = vector.shape_cast %55 : vector<1xf32> to vector<1x1x1xf32>
      %57 = vector.extract %56[0, 0, 0] : f32 from vector<1x1x1xf32>
      %58 = vector.broadcast %57 : f32 to vector<1x1x1x1xf32>
      %c0_27 = arith.constant 0 : index
      %c0_28 = arith.constant 0 : index
      %c0_29 = arith.constant 0 : index
      %c0_30 = arith.constant 0 : index
      %59 = vector.load %arg5[%c0_27, %c0_28, %c0_29, %c0_30] : memref<1x1x1x1xf32, #tpu.memory_space<vmem>>, vector<1x1x1x1xf32>
      tpu.vector_store %arg5[%c0_27, %c0_28, %c0_29, %c0_30], %58 {strides = array<i32>} : memref<1x1x1x1xf32, #tpu.memory_space<vmem>>, vector<1x1x1x1xf32>,
      %c0_31 = arith.constant 0 : index
      %c0_32 = arith.constant 0 : index
      %60 = vector.load %arg8[%c0_31, %c0_32] : memref<1x256xf32, #tpu.memory_space<vmem>>, vector<1x256xf32>
      %61 = vector.shape_cast %60 : vector<1x256xf32> to vector<1x1x256xf32>
      %cst_33 = arith.constant dense<0.000000e+00> : vector<1xf32>
      %62 = vector.multi_reduction <add>, %61, %cst_33 [1, 2] : vector<1x1x256xf32> to vector<1xf32>
      %63 = vector.shape_cast %62 : vector<1xf32> to vector<1x1x1xf32>
      %64 = vector.extract %63[0, 0, 0] : f32 from vector<1x1x1xf32>
      %65 = vector.broadcast %64 : f32 to vector<1x1x1x1xf32>
      %c0_34 = arith.constant 0 : index
      %c0_35 = arith.constant 0 : index
      %c0_36 = arith.constant 0 : index
      %c0_37 = arith.constant 0 : index
      %66 = vector.load %arg6[%c0_34, %c0_35, %c0_36, %c0_37] : memref<1x1x1x1xf32, #tpu.memory_space<vmem>>, vector<1x1x1x1xf32>
      tpu.vector_store %arg6[%c0_34, %c0_35, %c0_36, %c0_37], %65 {strides = array<i32>} : memref<1x1x1x1xf32, #tpu.memory_space<vmem>>, vector<1x1x1x1xf32>,
    } else {
    }
    return
  }
  func.func @transform_0(%arg0: i32, %arg1: i32, %arg2: i32) -> (i32, i32, i32) {
    %c1_i32 = arith.constant 1 : i32
    %0 = arith.muli %arg1, %c1_i32 : i32
    %1 = arith.addi %0, %arg2 : i32
    %c0_i32 = arith.constant 0 : i32
    %c0_i32_0 = arith.constant 0 : i32
    return %arg0, %c0_i32, %1 : i32, i32, i32
  }
  func.func @transform_1(%arg0: i32, %arg1: i32, %arg2: i32) -> (i32, i32, i32) {
    %c1_i32 = arith.constant 1 : i32
    %0 = arith.muli %arg1, %c1_i32 : i32
    %1 = arith.addi %0, %arg2 : i32
    %c0_i32 = arith.constant 0 : i32
    %c0_i32_0 = arith.constant 0 : i32
    return %arg0, %c0_i32, %1 : i32, i32, i32
  }
  func.func @transform_2(%arg0: i32, %arg1: i32, %arg2: i32) -> (i32, i32, i32, i32) {
    %c0_i32 = arith.constant 0 : i32
    %c0_i32_0 = arith.constant 0 : i32
    %c0_i32_1 = arith.constant 0 : i32
    return %arg0, %arg1, %c0_i32, %c0_i32_0 : i32, i32, i32, i32
  }
  func.func @transform_3(%arg0: i32, %arg1: i32, %arg2: i32) -> (i32, i32, i32, i32) {
    %c0_i32 = arith.constant 0 : i32
    %c0_i32_0 = arith.constant 0 : i32
    %c0_i32_1 = arith.constant 0 : i32
    return %arg0, %arg1, %c0_i32, %c0_i32_0 : i32, i32, i32, i32
  }
}

</mosaic_0001>

<llo_original>
// kernel: d_ce_loss.1
$region0: #{d_ce_loss.1}
  #allocation0 [shape = 'u32[]', space=smem, size = 0x4, offset = 0x4, fixed_abs, tag = 'smem constant byte address 0x4 - core index']
  #allocation1 [shape = 'u32[144,128]{1,0:T(1,128)}', space=vmem, size = 0x12000, scoped, tag = 'internal scratch']
  #allocation2 [shape = 'f32[1,256]{1,0:T(1,128)}', space=vmem, size = 0x400, scoped, tag = 'scratch operand']
  #allocation3 [shape = 'f32[1,256]{1,0:T(1,128)}', space=vmem, size = 0x400, scoped, tag = 'scratch operand']
  %s0 = inlined_call_operand.vmem [shape: f32[2,71,256], index: 0, kind: input, shape index: {}]
  %s1 = inlined_call_operand.vmem [shape: s32[2,1,256], index: 1, kind: input, shape index: {}]
  %s2 = inlined_call_operand.vmem [shape: f32[2,1,1,1], index: 2, kind: output, shape index: {0}]
  %s3 = inlined_call_operand.vmem [shape: f32[2,1,1,1], index: 3, kind: output, shape index: {1}]
  %4 = xla_tuple %s2, %s3
  %s5 = sld [smem:[#allocation0]]
  $region57: #{d_ce_loss.1} parent=0
    _
  %s7 = ssub.s32 1, %s5
  %s8 = scalar_select 0, %s7, %s5
  loop: start=0, step=1, limit=4
  $region2: #{d_ce_loss.1} parent=0 // loop_pre_header
    _
  $region3: #{d_ce_loss.1} parent=0 // loop_header
    %s10 = sphi 0, %s14
    %p11 = scmp.ge.s32.totalorder %s10, 4
    %s17 = sphi 0, %s36
    %s18 = sphi 0, %s32
    %s19 = sphi 0, %s28
    %s20 = sphi 0, %s17
    %s21 = sphi 0, %s18
    %s22 = sphi 0, %s19
    %s23 = sphi 0, %s20
    %s24 = sphi 0, %s21
    %s25 = sphi 0, %s22
    %s43 = sphi 0, %s45
    %s46 = sphi 0, %s43
    %s47 = sphi 0, %s46
    %s63 = sphi 0, %s47
    %s73 = sphi 0, %s75
    %s76 = sphi 0, %s73
    %s77 = sphi 0, %s76
    %s93 = sphi 0, %s77
    %s101 = sphi 0, %s103
    %s104 = sphi 0, %s101
    %s105 = sphi 0, %s104
    %s121 = sphi 0, %s105
    %s129 = sphi 0, %s131
    %s132 = sphi 0, %s129
    %s133 = sphi 0, %s132
    %s149 = sphi 0, %s133
  $region4: #{d_ce_loss.1} parent=0 // loop_header_branch
    %13 = sbr.rel (%p11) target = $region8
  $region5: #{d_ce_loss.1} parent=0 // loop_body
    %s15 = ssub.s32 %s10, 1
    %s16 = ssub.s32 %s10, 2
    %s26 = sadd.s32 1, %s19
    %p27 = scmp.ge.s32.totalorder %s26, 1
    %s28 = scalar_select %p27, 0, %s26
    %s29 = sadd.s32 1, %s18
    %s30 = scalar_select %p27, %s29, %s18
    %p31 = scmp.ge.s32.totalorder %s30, 1
    %s32 = scalar_select %p31, 0, %s30
    %s33 = sadd.s32 1, %s17
    %s34 = scalar_select %p31, %s33, %s17
    %p35 = scmp.ge.s32.totalorder %s34, 2
    %s36 = scalar_select %p35, 0, %s34
    %s37 = sadd.s32 %s18, %s19
    %s38 = sadd.s32 %s32, %s28
    %s39 = ssub.s32 %s17, %s36
    %s40 = ssub.s32 %s37, %s38
    %s41 = sor.u32 %s39, %s40
    %p42 = scmp.eq.s32.totalorder %s41, 0
    %s44 = sadd.s32 %s43, 1
    %s45 = scalar_select %p42, %s43, %s44
    %p48 = pneg %p42
    %p49 = scmp.eq.s32.totalorder %s10, 1
    %p50 = por %p48, %p49
    %p51 = scmp.ne.s32.totalorder %s43, %s46
    %p52 = scmp.eq.s32.totalorder %s10, 0
    %p53 = por %p51, %p52
    %p54 = scmp.ne.s32.totalorder %s43, %s46
    %p55 = scmp.eq.s32.totalorder %s15, 1
    %p56 = por %p54, %p55
    %p57 = scmp.ne.s32.totalorder %s46, %s47
    %p58 = scmp.eq.s32.totalorder %s15, 0
    %p59 = por %p57, %p58
    %p60 = scmp.ne.s32.totalorder %s46, %s47
    %p61 = scmp.eq.s32.totalorder %s16, 1
    %p62 = por %p60, %p61
    %p64 = scmp.ne.s32.totalorder %s47, %s63
    %p65 = scmp.eq.s32.totalorder %s16, 0
    %p66 = por %p64, %p65
    %s67 = sadd.s32 %s18, %s19
    %s68 = sadd.s32 %s32, %s28
    %s69 = ssub.s32 %s17, %s36
    %s70 = ssub.s32 %s67, %s68
    %s71 = sor.u32 %s69, %s70
    %p72 = scmp.eq.s32.totalorder %s71, 0
    %s74 = sadd.s32 %s73, 1
    %s75 = scalar_select %p72, %s73, %s74
    %p78 = pneg %p72
    %p79 = scmp.eq.s32.totalorder %s10, 1
    %p80 = por %p78, %p79
    %p81 = scmp.ne.s32.totalorder %s73, %s76
    %p82 = scmp.eq.s32.totalorder %s10, 0
    %p83 = por %p81, %p82
    %p84 = scmp.ne.s32.totalorder %s73, %s76
    %p85 = scmp.eq.s32.totalorder %s15, 1
    %p86 = por %p84, %p85
    %p87 = scmp.ne.s32.totalorder %s76, %s77
    %p88 = scmp.eq.s32.totalorder %s15, 0
    %p89 = por %p87, %p88
    %p90 = scmp.ne.s32.totalorder %s76, %s77
    %p91 = scmp.eq.s32.totalorder %s16, 1
    %p92 = por %p90, %p91
    %p94 = scmp.ne.s32.totalorder %s77, %s93
    %p95 = scmp.eq.s32.totalorder %s16, 0
    %p96 = por %p94, %p95
    %s97 = ssub.s32 %s17, %s36
    %s98 = ssub.s32 %s18, %s32
    %s99 = sor.u32 %s97, %s98
    %p100 = scmp.eq.s32.totalorder %s99, 0
    %s102 = sadd.s32 %s101, 1
    %s103 = scalar_select %p100, %s101, %s102
    %p106 = pneg %p100
    %p107 = scmp.eq.s32.totalorder %s10, 1
    %p108 = por %p106, %p107
    %p109 = scmp.ne.s32.totalorder %s101, %s104
    %p110 = scmp.eq.s32.totalorder %s10, 0
    %p111 = por %p109, %p110
    %p112 = scmp.ne.s32.totalorder %s101, %s104
    %p113 = scmp.eq.s32.totalorder %s15, 1
    %p114 = por %p112, %p113
    %p115 = scmp.ne.s32.totalorder %s104, %s105
    %p116 = scmp.eq.s32.totalorder %s15, 0
    %p117 = por %p115, %p116
    %p118 = scmp.ne.s32.totalorder %s104, %s105
    %p119 = scmp.eq.s32.totalorder %s16, 1
    %p120 = por %p118, %p119
    %p122 = scmp.ne.s32.totalorder %s105, %s121
    %p123 = scmp.eq.s32.totalorder %s16, 0
    %p124 = por %p122, %p123
    %s125 = ssub.s32 %s17, %s36
    %s126 = ssub.s32 %s18, %s32
    %s127 = sor.u32 %s125, %s126
    %p128 = scmp.eq.s32.totalorder %s127, 0
    %s130 = sadd.s32 %s129, 1
    %s131 = scalar_select %p128, %s129, %s130
    %p134 = pneg %p128
    %p135 = scmp.eq.s32.totalorder %s10, 1
    %p136 = por %p134, %p135
    %p137 = scmp.ne.s32.totalorder %s129, %s132
    %p138 = scmp.eq.s32.totalorder %s10, 0
    %p139 = por %p137, %p138
    %p140 = scmp.ne.s32.totalorder %s129, %s132
    %p141 = scmp.eq.s32.totalorder %s15, 1
    %p142 = por %p140, %p141
    %p143 = scmp.ne.s32.totalorder %s132, %s133
    %p144 = scmp.eq.s32.totalorder %s15, 0
    %p145 = por %p143, %p144
    %p146 = scmp.ne.s32.totalorder %s132, %s133
    %p147 = scmp.eq.s32.totalorder %s16, 1
    %p148 = por %p146, %p147
    %p150 = scmp.ne.s32.totalorder %s133, %s149
    %p151 = scmp.eq.s32.totalorder %s16, 0
    %p152 = por %p150, %p151
    %p153 = scmp.le.s32.totalorder 1, %s10
    %p154 = scmp.lt.s32.totalorder %s10, 3
    %p155 = pnand %p153, %p154
    %p156 = pneg %p155
    // Predicated region
    $region9: #{d_ce_loss.1} parent=5 // pred_check
      _
    $region10: #{d_ce_loss.1} parent=5 // pred_check_branch
      %158 = sbr.rel (%p155) target = $region12
    $region11: #{d_ce_loss.1} parent=5 // pred_region
      %s159 = ssub.s32 %s10, 1
    $region12: #{d_ce_loss.1} parent=5 // pred_fallthru
      _
    %p160 = scmp.lt.s32.totalorder %s10, 2
    // Predicated region
    $region13: #{d_ce_loss.1} parent=5 // pred_check
      %p161 = pneg %p160
    $region14: #{d_ce_loss.1} parent=5 // pred_check_branch
      %163 = sbr.rel (%p161) target = $region16
    $region15: #{d_ce_loss.1} parent=5 // pred_region
      // Predicated region
      $region17: #{d_ce_loss.1} parent=15 // pred_check
        %p164 = pneg %p53
      $region18: #{d_ce_loss.1} parent=15 // pred_check_branch
        %166 = sbr.rel (%p164) target = $region20
      $region19: #{d_ce_loss.1} parent=15 // pred_region
        %s167 = sadd.s32 %s18, %s19
        %s168 = smul.u32 2, %s167
        %p169 = scmp.lt.s32.totalorder %s17, 1
        %s170 = scalar_select %p169, %s17, 1
        %p171 = scmp.lt.s32.totalorder %s168, 1
        %s172 = scalar_select %p171, %s168, 1
        %s173 = smul.addr %s170, 18
        %s174 = sadd.s32 %s172, %s173
        %s175 = smul.addr %s174, 8
        %s176 = scalar_lea.vmem %s0, %s175
        %s177 = sadd.s32 %s18, %s19
        %s178 = smul.u32 2, %s177
      $region20: #{d_ce_loss.1} parent=15 // pred_fallthru
        _
      // Predicated region
      $region21: #{d_ce_loss.1} parent=15 // pred_check
        %p179 = pneg %p83
      $region22: #{d_ce_loss.1} parent=15 // pred_check_branch
        %181 = sbr.rel (%p179) target = $region24
      $region23: #{d_ce_loss.1} parent=15 // pred_region
        %s182 = sadd.s32 %s18, %s19
        %s183 = smul.u32 2, %s182
        %p184 = scmp.lt.s32.totalorder %s17, 1
        %s185 = scalar_select %p184, %s17, 1
        %p186 = scmp.lt.s32.totalorder %s183, 1
        %s187 = scalar_select %p186, %s183, 1
        %s188 = smul.addr %s185, 2
        %s189 = sadd.s32 %s187, %s188
        %s190 = scalar_lea.vmem %s1, %s189
        %s191 = sadd.s32 %s18, %s19
        %s192 = smul.u32 2, %s191
      $region24: #{d_ce_loss.1} parent=15 // pred_fallthru
        _
    $region16: #{d_ce_loss.1} parent=5 // pred_fallthru
      _
    %p193 = scmp.le.s32.totalorder 1, %s10
    %p194 = scmp.lt.s32.totalorder %s10, 3
    %p195 = pnand %p193, %p194
    %p196 = pneg %p195
    // Predicated region
    $region25: #{d_ce_loss.1} parent=5 // pred_check
      _
    $region26: #{d_ce_loss.1} parent=5 // pred_check_branch
      %198 = sbr.rel (%p195) target = $region28
    $region27: #{d_ce_loss.1} parent=5 // pred_region
      %s199 = ssub.s32 %s10, 1
      %s200 = sadd.s32 %s21, %s22
      %s201 = smul.u32 2, %s200
      %p202 = scmp.lt.s32.totalorder %s20, 1
      %s203 = scalar_select %p202, %s20, 1
      %p204 = scmp.lt.s32.totalorder %s201, 1
      %s205 = scalar_select %p204, %s201, 1
      %s206 = smul.addr %s203, 18
      %s207 = sadd.s32 %s205, %s206
      %s208 = smul.addr %s207, 8
      %s209 = scalar_lea.vmem %s0, %s208
      %p210 = pneg %p59
      %p211 = pneg %p56
      %s212 = sadd.s32 %s21, %s22
      %s213 = smul.u32 2, %s212
      %p214 = scmp.lt.s32.totalorder %s20, 1
      %s215 = scalar_select %p214, %s20, 1
      %p216 = scmp.lt.s32.totalorder %s213, 1
      %s217 = scalar_select %p216, %s213, 1
      %s218 = smul.addr %s215, 2
      %s219 = sadd.s32 %s217, %s218
      %s220 = scalar_lea.vmem %s1, %s219
      %p221 = pneg %p89
      %p222 = pneg %p86
      %p223 = pneg %p117
      %p224 = pneg %p114
      %p225 = scmp.lt.s32.totalorder %s20, 1
      %s226 = scalar_select %p225, %s20, 1
      %p227 = scmp.lt.s32.totalorder %s21, 0
      %s228 = scalar_select %p227, %s21, 0
      %s229 = sadd.s32 %s228, %s226
      %s230 = scalar_lea.vmem %s2, %s229
      %p231 = pneg %p145
      %p232 = pneg %p142
      %p233 = scmp.lt.s32.totalorder %s20, 1
      %s234 = scalar_select %p233, %s20, 1
      %p235 = scmp.lt.s32.totalorder %s21, 0
      %s236 = scalar_select %p235, %s21, 0
      %s237 = sadd.s32 %s236, %s234
      %s238 = scalar_lea.vmem %s3, %s237
      %s239 = sadd.s32 %s21, %s22
      %s240 = smul.u32 2, %s239
      %p241 = scmp.lt.s32.totalorder %s20, 1
      %s242 = scalar_select %p241, %s20, 1
      %p243 = scmp.lt.s32.totalorder %s240, 1
      %s244 = scalar_select %p243, %s240, 1
      %s245 = smul.addr %s242, 18
      %s246 = sadd.s32 %s244, %s245
      %s247 = smul.addr %s246, 8
      %s248 = scalar_lea.vmem %s0, %s247
      %s249 = sadd.s32 %s21, %s22
      %s250 = smul.u32 2, %s249
      %s251 = sadd.s32 %s21, %s22
      %s252 = smul.u32 2, %s251
      %p253 = scmp.lt.s32.totalorder %s20, 1
      %s254 = scalar_select %p253, %s20, 1
      %p255 = scmp.lt.s32.totalorder %s252, 1
      %s256 = scalar_select %p255, %s252, 1
      %s257 = smul.addr %s254, 2
      %s258 = sadd.s32 %s256, %s257
      %s259 = scalar_lea.vmem %s1, %s258
      %s260 = sadd.s32 %s21, %s22
      %s261 = smul.u32 2, %s260
      %p262 = scmp.lt.s32.totalorder %s20, 1
      %s263 = scalar_select %p262, %s20, 1
      %p264 = scmp.lt.s32.totalorder %s21, 0
      %s265 = scalar_select %p264, %s21, 0
      %s266 = sadd.s32 %s265, %s263
      %s267 = scalar_lea.vmem %s2, %s266
      %p268 = scmp.lt.s32.totalorder %s20, 1
      %s269 = scalar_select %p268, %s20, 1
      %p270 = scmp.lt.s32.totalorder %s21, 0
      %s271 = scalar_select %p270, %s21, 0
      %s272 = sadd.s32 %s271, %s269
      %s273 = scalar_lea.vmem %s3, %s272
      %p274 = scmp.eq.s32.totalorder %s22, 0
      // Predicated region
      $region29: #{d_ce_loss.1} parent=27 // pred_check
        %p275 = pneg %p274
      $region30: #{d_ce_loss.1} parent=27 // pred_check_branch
        %277 = sbr.rel (%p275) target = $region32
      $region31: #{d_ce_loss.1} parent=27 // pred_region
        %v278 = vlaneseq
        %vm279 = vcmp.ge.s32.totalorder %v278, 0
        %vm280 = vcmp.lt.s32.totalorder %v278, 256
        %vm281 = vmand %vm279, %vm280
        %282 = vst.msk [vmem:[#allocation2] sm:$0x3] %vm281, 0.0
        %283 = vst.msk [vmem:[#allocation3] sm:$0x3] %vm281, 0.0
      $region32: #{d_ce_loss.1} parent=27 // pred_fallthru
        _
      %v284 = vld [vmem:[%s248] sm:$0xff]
      %v285 = vld [vmem:[%s248 + $0x8] sm:$0xff]
      %v286 = vld [vmem:[%s248 + $0x10] sm:$0xff]
      %v287 = vld [vmem:[%s248 + $0x18] sm:$0xff]
      %v288 = vld [vmem:[%s248 + $0x20] sm:$0xff]
      %v289 = vld [vmem:[%s248 + $0x28] sm:$0xff]
      %v290 = vld [vmem:[%s248 + $0x30] sm:$0xff]
      %v291 = vld [vmem:[%s248 + $0x38] sm:$0xff]
      %v292 = vld [vmem:[%s248 + $0x40] sm:$0xff]
      %v293 = vld [vmem:[%s248 + $0x48] sm:$0xff]
      %v294 = vld [vmem:[%s248 + $0x50] sm:$0xff]
      %v295 = vld [vmem:[%s248 + $0x58] sm:$0xff]
      %v296 = vld [vmem:[%s248 + $0x60] sm:$0xff]
      %v297 = vld [vmem:[%s248 + $0x68] sm:$0xff]
      %v298 = vld [vmem:[%s248 + $0x70] sm:$0xff]
      %v299 = vld [vmem:[%s248 + $0x78] sm:$0xff]
      %v300 = vld [vmem:[%s248 + $0x80] sm:$0x7f]
      %v301 = vld [vmem:[%s248 + $0x88] sm:$0x7f]
      %v302 = vld [vmem:[%s259] sm:$0x3]
      %s303 = sadd.s32 %s21, %s22
      %s304 = smul.u32 %s303, 256
      %v305 = vlaneseq
      %v306 = vand.u32 %v305, 127
      %v307 = vadd.s32 %v306, 128
      %v308 = vstv %s304
      %v309 = vadd.s32 %v308, %v306
      %v310 = vadd.s32 %v308, %v307
      %vm311 = vcmp.ge.s32.totalorder %v302, 0
      %vm312 = vcmp.le.s32.totalorder %v302, 70
      %vm313 = vmand %vm311, %vm312
      %vm314 = vcmp.lt.s32.totalorder %v309, 256
      %vm315 = vcmp.lt.s32.totalorder %v310, 256
      %v316 = vsel %vm314, 1, 0
      %v317 = vsel %vm315, 1, 0
      %v318 = vcombine.low %v316, %v317
      %v320 = vunpack.c.l.s4 1966171168
      %v321 = vunpack.c.0.s8 %v320
      %v322 = vlaneseq
      %v323 = vshrl.u32 %v322, 7
      %v324 = vsub.s32 %v321, %v323
      %v325 = vrot.slane %v318, %v324
      %v327 = vunpack.c.l.s4 1966171168
      %v328 = vunpack.c.0.s8 %v327
      %v329 = vlaneseq
      %v330 = vshrl.u32 %v329, 7
      %v331 = vsub.s32 %v328, %v330
      %v332 = vrot.slane %v325, %v331
      %vm333 = vcmp.ne.s32.totalorder %v332, 0
      %vm334 = vmand %vm313, %vm333
      %v335 = vmax.f32 %v284, %v288
      %v336 = vmax.f32 %v286, %v290
      %v337 = vmax.f32 %v335, %v292
      %v338 = vmax.f32 %v336, %v294
      %v339 = vmax.f32 %v337, %v296
      %v340 = vmax.f32 %v338, %v298
      %vm341 = vcmask 1046528
      %v342 = vsel %vm341, %v300, -inf
      %v343 = vmax.f32 %v339, %v342
      %v344 = vmax.f32 %v343, %v340
      %v345 = vrot.slane %v344, 4
      %v346 = vmax.f32 %v344, %v345
      %v347 = vrot.slane %v346, 2
      %v348 = vmax.f32 %v346, %v347
      %v349 = vrot.slane %v348, 1
      %v350 = vmax.f32 %v348, %v349
      %v351 = vmax.f32 %v285, %v289
      %v352 = vmax.f32 %v287, %v291
      %v353 = vmax.f32 %v351, %v293
      %v354 = vmax.f32 %v352, %v295
      %v355 = vmax.f32 %v353, %v297
      %v356 = vmax.f32 %v354, %v299
      %v357 = vsel %vm341, %v301, -inf
      %v358 = vmax.f32 %v355, %v357
      %v359 = vmax.f32 %v358, %v356
      %v360 = vrot.slane %v359, 4
      %v361 = vmax.f32 %v359, %v360
      %v362 = vrot.slane %v361, 2
      %v363 = vmax.f32 %v361, %v362
      %v364 = vrot.slane %v363, 1
      %v365 = vmax.f32 %v363, %v364
      %v366 = vsub.f32 %v284, %v350
      %v367 = vsub.f32 %v285, %v365
      %v368 = vsub.f32 %v286, %v350
      %v369 = vsub.f32 %v287, %v365
      %v370 = vsub.f32 %v288, %v350
      %v371 = vsub.f32 %v289, %v365
      %v372 = vsub.f32 %v290, %v350
      %v373 = vsub.f32 %v291, %v365
      %v374 = vsub.f32 %v292, %v350
      %v375 = vsub.f32 %v293, %v365
      %v376 = vsub.f32 %v294, %v350
      %v377 = vsub.f32 %v295, %v365
      %v378 = vsub.f32 %v296, %v350
      %v379 = vsub.f32 %v297, %v365
      %v380 = vsub.f32 %v298, %v350
      %v381 = vsub.f32 %v299, %v365
      %v382 = vsub.f32 %v300, %v350
      %v383 = vsub.f32 %v301, %v365
      %v384 = vmul.f32 %v366, 1.442695
      %v385 = vpow.pop %v384
      %v386 = vmul.f32 %v367, 1.442695
      %v387 = vpow.pop %v386
      %v388 = vmul.f32 %v368, 1.442695
      %v389 = vpow.pop %v388
      %v390 = vmul.f32 %v369, 1.442695
      %v391 = vpow.pop %v390
      %v392 = vmul.f32 %v370, 1.442695
      %v393 = vpow.pop %v392
      %v394 = vmul.f32 %v371, 1.442695
      %v395 = vpow.pop %v394
      %v396 = vmul.f32 %v372, 1.442695
      %v397 = vpow.pop %v396
      %v398 = vmul.f32 %v373, 1.442695
      %v399 = vpow.pop %v398
      %v400 = vmul.f32 %v374, 1.442695
      %v401 = vpow.pop %v400
      %v402 = vmul.f32 %v375, 1.442695
      %v403 = vpow.pop %v402
      %v404 = vmul.f32 %v376, 1.442695
      %v405 = vpow.pop %v404
      %v406 = vmul.f32 %v377, 1.442695
      %v407 = vpow.pop %v406
      %v408 = vmul.f32 %v378, 1.442695
      %v409 = vpow.pop %v408
      %v410 = vmul.f32 %v379, 1.442695
      %v411 = vpow.pop %v410
      %v412 = vmul.f32 %v380, 1.442695
      %v413 = vpow.pop %v412
      %v414 = vmul.f32 %v381, 1.442695
      %v415 = vpow.pop %v414
      %v416 = vmul.f32 %v382, 1.442695
      %v417 = vpow.pop %v416
      %v418 = vmul.f32 %v383, 1.442695
      %v419 = vpow.pop %v418
      %v420 = vlaneseq
      %v421 = vshrl.u32 %v420, 7
      %v422 = vadd.s32 %v421, 8
      %v423 = vadd.s32 %v421, 16
      %v424 = vadd.s32 %v421, 24
      %v425 = vadd.s32 %v421, 32
      %v426 = vadd.s32 %v421, 40
      %v427 = vadd.s32 %v421, 48
      %v428 = vadd.s32 %v421, 56
      %v429 = vadd.s32 %v421, 64
      %v430 = vlaneseq
      %v431 = vshrl.u32 %v430, 7
      %v432 = vsub.s32 0, %v431
      %v433 = vrot.slane %v302, %v432
      %v434 = vlaneseq
      %v435 = vshrl.u32 %v434, 7
      %v436 = vsub.s32 1, %v435
      %v437 = vrot.slane %v302, %v436
      %vm438 = vcmp.eq.s32.totalorder %v421, %v433
      %vm439 = vcmp.eq.s32.totalorder %v421, %v437
      %vm440 = vcmp.eq.s32.totalorder %v422, %v433
      %vm441 = vcmp.eq.s32.totalorder %v422, %v437
      %vm442 = vcmp.eq.s32.totalorder %v423, %v433
      %vm443 = vcmp.eq.s32.totalorder %v423, %v437
      %vm444 = vcmp.eq.s32.totalorder %v424, %v433
      %vm445 = vcmp.eq.s32.totalorder %v424, %v437
      %vm446 = vcmp.eq.s32.totalorder %v425, %v433
      %vm447 = vcmp.eq.s32.totalorder %v425, %v437
      %vm448 = vcmp.eq.s32.totalorder %v426, %v433
      %vm449 = vcmp.eq.s32.totalorder %v426, %v437
      %vm450 = vcmp.eq.s32.totalorder %v427, %v433
      %vm451 = vcmp.eq.s32.totalorder %v427, %v437
      %vm452 = vcmp.eq.s32.totalorder %v428, %v433
      %vm453 = vcmp.eq.s32.totalorder %v428, %v437
      %vm454 = vcmp.eq.s32.totalorder %v429, %v433
      %vm455 = vcmp.eq.s32.totalorder %v429, %v437
      %v456 = vsel %vm438, %v284, 0.0
      %v457 = vsel %vm439, %v285, 0.0
      %v458 = vsel %vm440, %v286, 0.0
      %v459 = vsel %vm441, %v287, 0.0
      %v460 = vsel %vm442, %v288, 0.0
      %v461 = vsel %vm443, %v289, 0.0
      %v462 = vsel %vm444, %v290, 0.0
      %v463 = vsel %vm445, %v291, 0.0
      %v464 = vsel %vm446, %v292, 0.0
      %v465 = vsel %vm447, %v293, 0.0
      %v466 = vsel %vm448, %v294, 0.0
      %v467 = vsel %vm449, %v295, 0.0
      %v468 = vsel %vm450, %v296, 0.0
      %v469 = vsel %vm451, %v297, 0.0
      %v470 = vsel %vm452, %v298, 0.0
      %v471 = vsel %vm453, %v299, 0.0
      %v472 = vsel %vm454, %v300, 0.0
      %v473 = vsel %vm455, %v301, 0.0
      %vm474 = vcmask 580608
      %v476 = vsel %vm474, 1.0, 0
      %v479 = vsel %vm341, %v417, 0
      %v482 = vsel %vm341, %v419, 0
      %v484 = vand.u32 %v387, 4294901760
      %485 = vmatprep.subr.mxu0 %v484
      %v486 = vand.u32 %v385, 4294901760
      %487 = vmatpush1.msra.mxu0 %v486
      %v488 = vand.u32 %v391, 4294901760
      %489 = vmatprep.subr.mxu0 %v488
      %v490 = vand.u32 %v389, 4294901760
      %491 = vmatpush1.msra.mxu0 %v490
      %v492 = vand.u32 %v395, 4294901760
      %493 = vmatprep.subr.mxu0 %v492
      %v494 = vand.u32 %v393, 4294901760
      %495 = vmatpush1.msra.mxu0 %v494
      %v496 = vand.u32 %v399, 4294901760
      %497 = vmatprep.subr.mxu0 %v496
      %v498 = vand.u32 %v397, 4294901760
      %499 = vmatpush1.msra.mxu0 %v498
      %v500 = vand.u32 %v403, 4294901760
      %501 = vmatprep.subr.mxu0 %v500
      %v502 = vand.u32 %v401, 4294901760
      %503 = vmatpush1.msra.mxu0 %v502
      %v504 = vand.u32 %v407, 4294901760
      %505 = vmatprep.subr.mxu0 %v504
      %v506 = vand.u32 %v405, 4294901760
      %507 = vmatpush1.msra.mxu0 %v506
      %v508 = vand.u32 %v411, 4294901760
      %509 = vmatprep.subr.mxu0 %v508
      %v510 = vand.u32 %v409, 4294901760
      %511 = vmatpush1.msra.mxu0 %v510
      %v512 = vand.u32 %v415, 4294901760
      %513 = vmatprep.subr.mxu0 %v512
      %v514 = vand.u32 %v413, 4294901760
      %515 = vmatpush1.msra.mxu0 %v514
      %v516 = vand.u32 %v482, 4294901760
      %517 = vmatprep.subr.mxu0 %v516
      %v518 = vand.u32 %v479, 4294901760
      %519 = vmatpush1.msra.mxu0 %v518
      %520 = vmatprep.subr.mxu0 0.0
      %521 = vmatpush1.msra.mxu0 0.0
      %522 = vmatprep.subr.mxu0 0.0
      %523 = vmatpush1.msra.mxu0 0.0
      %524 = vmatprep.subr.mxu0 0.0
      %525 = vmatpush1.msra.mxu0 0.0
      %526 = vmatprep.subr.mxu0 0.0
      %527 = vmatpush1.msra.mxu0 0.0
      %528 = vmatprep.subr.mxu0 0.0
      %529 = vmatpush1.msra.mxu0 0.0
      %530 = vmatprep.subr.mxu0 0.0
      %531 = vmatpush1.msra.mxu0 0.0
      %532 = vmatprep.subr.mxu0 0.0
      %533 = vmatpush1.msra.mxu0 0.0
      %534 = vmatprep.subr.mxu0 0.0
      %535 = vmatpush1.msra.mxu0 0.0
      %536 = vmatprep.subr.mxu0 0.0
      %537 = vmatpush1.msra.mxu0 0.0
      %538 = vmatprep.subr.mxu0 0.0
      %539 = vmatpush1.msra.mxu0 0.0
      %540 = vmatprep.subr.mxu0 0.0
      %541 = vmatpush1.msra.mxu0 0.0
      %542 = vmatprep.subr.mxu0 0.0
      %543 = vmatpush1.msra.mxu0 0.0
      %544 = vmatprep.subr.mxu0 0.0
      %545 = vmatpush1.msra.mxu0 0.0
      %546 = vmatprep.subr.mxu0 0.0
      %547 = vmatpush1.msra.mxu0 0.0
      %548 = vmatprep.subr.mxu0 0.0
      %549 = vmatpush1.msra.mxu0 0.0
      %550 = vmatprep.subr.mxu0 0.0
      %551 = vmatpush1.msra.mxu0 0.0
      %552 = vmatprep.subr.mxu0 0.0
      %553 = vmatpush1.msra.mxu0 0.0
      %554 = vmatprep.subr.mxu0 0.0
      %555 = vmatpush1.msra.mxu0 0.0
      %556 = vmatprep.subr.mxu0 0.0
      %557 = vmatpush1.msra.mxu0 0.0
      %558 = vmatprep.subr.mxu0 0.0
      %559 = vmatpush1.msra.mxu0 0.0
      %560 = vmatprep.subr.mxu0 0.0
      %561 = vmatpush1.msra.mxu0 0.0
      %562 = vmatprep.subr.mxu0 0.0
      %563 = vmatpush1.msra.mxu0 0.0
      %564 = vmatprep.subr.mxu0 0.0
      %565 = vmatpush1.msra.mxu0 0.0
      %566 = vmatprep.mubr.f32.mxu0 0.0
      %v567 = vand.u32 %v476, 4294901760
      %v568 = vsub.f32 %v476, %v567
      %v569 = vand.u32 %v568, 4294901760
      %v570 = vsub.f32 %v568, %v569
      %v571 = vand.u32 %v570, 4294901760
      %572 = vmatmul.mubr.f32.gmra.mrb[0].mxu0 %v571
      %v573 = vpop.f32.mrb[0].mxu0
      %v574 = vadd.f32 0.0, %v573
      %v575 = vpop.f32.mrb[0].mxu0
      %v576 = vadd.f32 0.0, %v575
      %577 = vdwg.mxu0
      %v578 = vand.u32 %v387, 4294901760
      %v579 = vsub.f32 %v387, %v578
      %v580 = vand.u32 %v579, 4294901760
      %v581 = vsub.f32 %v579, %v580
      %v582 = vand.u32 %v581, 4294901760
      %583 = vmatprep.subr.mxu0 %v582
      %v584 = vand.u32 %v385, 4294901760
      %v585 = vsub.f32 %v385, %v584
      %v586 = vand.u32 %v585, 4294901760
      %v587 = vsub.f32 %v585, %v586
      %v588 = vand.u32 %v587, 4294901760
      %589 = vmatpush1.msra.mxu0 %v588
      %v590 = vand.u32 %v391, 4294901760
      %v591 = vsub.f32 %v391, %v590
      %v592 = vand.u32 %v591, 4294901760
      %v593 = vsub.f32 %v591, %v592
      %v594 = vand.u32 %v593, 4294901760
      %595 = vmatprep.subr.mxu0 %v594
      %v596 = vand.u32 %v389, 4294901760
      %v597 = vsub.f32 %v389, %v596
      %v598 = vand.u32 %v597, 4294901760
      %v599 = vsub.f32 %v597, %v598
      %v600 = vand.u32 %v599, 4294901760
      %601 = vmatpush1.msra.mxu0 %v600
      %v602 = vand.u32 %v395, 4294901760
      %v603 = vsub.f32 %v395, %v602
      %v604 = vand.u32 %v603, 4294901760
      %v605 = vsub.f32 %v603, %v604
      %v606 = vand.u32 %v605, 4294901760
      %607 = vmatprep.subr.mxu0 %v606
      %v608 = vand.u32 %v393, 4294901760
      %v609 = vsub.f32 %v393, %v608
      %v610 = vand.u32 %v609, 4294901760
      %v611 = vsub.f32 %v609, %v610
      %v612 = vand.u32 %v611, 4294901760
      %613 = vmatpush1.msra.mxu0 %v612
      %v614 = vand.u32 %v399, 4294901760
      %v615 = vsub.f32 %v399, %v614
      %v616 = vand.u32 %v615, 4294901760
      %v617 = vsub.f32 %v615, %v616
      %v618 = vand.u32 %v617, 4294901760
      %619 = vmatprep.subr.mxu0 %v618
      %v620 = vand.u32 %v397, 4294901760
      %v621 = vsub.f32 %v397, %v620
      %v622 = vand.u32 %v621, 4294901760
      %v623 = vsub.f32 %v621, %v622
      %v624 = vand.u32 %v623, 4294901760
      %625 = vmatpush1.msra.mxu0 %v624
      %v626 = vand.u32 %v403, 4294901760
      %v627 = vsub.f32 %v403, %v626
      %v628 = vand.u32 %v627, 4294901760
      %v629 = vsub.f32 %v627, %v628
      %v630 = vand.u32 %v629, 4294901760
      %631 = vmatprep.subr.mxu0 %v630
      %v632 = vand.u32 %v401, 4294901760
      %v633 = vsub.f32 %v401, %v632
      %v634 = vand.u32 %v633, 4294901760
      %v635 = vsub.f32 %v633, %v634
      %v636 = vand.u32 %v635, 4294901760
      %637 = vmatpush1.msra.mxu0 %v636
      %v638 = vand.u32 %v407, 4294901760
      %v639 = vsub.f32 %v407, %v638
      %v640 = vand.u32 %v639, 4294901760
      %v641 = vsub.f32 %v639, %v640
      %v642 = vand.u32 %v641, 4294901760
      %643 = vmatprep.subr.mxu0 %v642
      %v644 = vand.u32 %v405, 4294901760
      %v645 = vsub.f32 %v405, %v644
      %v646 = vand.u32 %v645, 4294901760
      %v647 = vsub.f32 %v645, %v646
      %v648 = vand.u32 %v647, 4294901760
      %649 = vmatpush1.msra.mxu0 %v648
      %v650 = vand.u32 %v411, 4294901760
      %v651 = vsub.f32 %v411, %v650
      %v652 = vand.u32 %v651, 4294901760
      %v653 = vsub.f32 %v651, %v652
      %v654 = vand.u32 %v653, 4294901760
      %655 = vmatprep.subr.mxu0 %v654
      %v656 = vand.u32 %v409, 4294901760
      %v657 = vsub.f32 %v409, %v656
      %v658 = vand.u32 %v657, 4294901760
      %v659 = vsub.f32 %v657, %v658
      %v660 = vand.u32 %v659, 4294901760
      %661 = vmatpush1.msra.mxu0 %v660
      %v662 = vand.u32 %v415, 4294901760
      %v663 = vsub.f32 %v415, %v662
      %v664 = vand.u32 %v663, 4294901760
      %v665 = vsub.f32 %v663, %v664
      %v666 = vand.u32 %v665, 4294901760
      %667 = vmatprep.subr.mxu0 %v666
      %v668 = vand.u32 %v413, 4294901760
      %v669 = vsub.f32 %v413, %v668
      %v670 = vand.u32 %v669, 4294901760
      %v671 = vsub.f32 %v669, %v670
      %v672 = vand.u32 %v671, 4294901760
      %673 = vmatpush1.msra.mxu0 %v672
      %v674 = vand.u32 %v482, 4294901760
      %v675 = vsub.f32 %v482, %v674
      %v676 = vand.u32 %v675, 4294901760
      %v677 = vsub.f32 %v675, %v676
      %v678 = vand.u32 %v677, 4294901760
      %679 = vmatprep.subr.mxu0 %v678
      %v680 = vand.u32 %v479, 4294901760
      %v681 = vsub.f32 %v479, %v680
      %v682 = vand.u32 %v681, 4294901760
      %v683 = vsub.f32 %v681, %v682
      %v684 = vand.u32 %v683, 4294901760
      %685 = vmatpush1.msra.mxu0 %v684
      %686 = vmatprep.subr.mxu0 0.0
      %687 = vmatpush1.msra.mxu0 0.0
      %688 = vmatprep.subr.mxu0 0.0
      %689 = vmatpush1.msra.mxu0 0.0
      %690 = vmatprep.subr.mxu0 0.0
      %691 = vmatpush1.msra.mxu0 0.0
      %692 = vmatprep.subr.mxu0 0.0
      %693 = vmatpush1.msra.mxu0 0.0
      %694 = vmatprep.subr.mxu0 0.0
      %695 = vmatpush1.msra.mxu0 0.0
      %696 = vmatprep.subr.mxu0 0.0
      %697 = vmatpush1.msra.mxu0 0.0
      %698 = vmatprep.subr.mxu0 0.0
      %699 = vmatpush1.msra.mxu0 0.0
      %700 = vmatprep.subr.mxu0 0.0
      %701 = vmatpush1.msra.mxu0 0.0
      %702 = vmatprep.subr.mxu0 0.0
      %703 = vmatpush1.msra.mxu0 0.0
      %704 = vmatprep.subr.mxu0 0.0
      %705 = vmatpush1.msra.mxu0 0.0
      %706 = vmatprep.subr.mxu0 0.0
      %707 = vmatpush1.msra.mxu0 0.0
      %708 = vmatprep.subr.mxu0 0.0
      %709 = vmatpush1.msra.mxu0 0.0
      %710 = vmatprep.subr.mxu0 0.0
      %711 = vmatpush1.msra.mxu0 0.0
      %712 = vmatprep.subr.mxu0 0.0
      %713 = vmatpush1.msra.mxu0 0.0
      %714 = vmatprep.subr.mxu0 0.0
      %715 = vmatpush1.msra.mxu0 0.0
      %716 = vmatprep.subr.mxu0 0.0
      %717 = vmatpush1.msra.mxu0 0.0
      %718 = vmatprep.subr.mxu0 0.0
      %719 = vmatpush1.msra.mxu0 0.0
      %720 = vmatprep.subr.mxu0 0.0
      %721 = vmatpush1.msra.mxu0 0.0
      %722 = vmatprep.subr.mxu0 0.0
      %723 = vmatpush1.msra.mxu0 0.0
      %724 = vmatprep.subr.mxu0 0.0
      %725 = vmatpush1.msra.mxu0 0.0
      %726 = vmatprep.subr.mxu0 0.0
      %727 = vmatpush1.msra.mxu0 0.0
      %728 = vmatprep.subr.mxu0 0.0
      %729 = vmatpush1.msra.mxu0 0.0
      %730 = vmatprep.subr.mxu0 0.0
      %731 = vmatpush1.msra.mxu0 0.0
      %732 = vmatprep.mubr.f32.mxu0 0.0
      %v733 = vand.u32 %v476, 4294901760
      %734 = vmatmul.mubr.f32.gmra.mrb[0].mxu0 %v733
      %v735 = vpop.f32.mrb[0].mxu0
      %v736 = vadd.f32 %v574, %v735
      %v737 = vpop.f32.mrb[0].mxu0
      %v738 = vadd.f32 %v576, %v737
      %739 = vdwg.mxu0
      %v740 = vand.u32 %v387, 4294901760
      %v741 = vsub.f32 %v387, %v740
      %742 = vmatprep.subr.mxu0 %v741
      %v743 = vand.u32 %v385, 4294901760
      %v744 = vsub.f32 %v385, %v743
      %745 = vmatpush1.msra.mxu0 %v744
      %v746 = vand.u32 %v391, 4294901760
      %v747 = vsub.f32 %v391, %v746
      %748 = vmatprep.subr.mxu0 %v747
      %v749 = vand.u32 %v389, 4294901760
      %v750 = vsub.f32 %v389, %v749
      %751 = vmatpush1.msra.mxu0 %v750
      %v752 = vand.u32 %v395, 4294901760
      %v753 = vsub.f32 %v395, %v752
      %754 = vmatprep.subr.mxu0 %v753
      %v755 = vand.u32 %v393, 4294901760
      %v756 = vsub.f32 %v393, %v755
      %757 = vmatpush1.msra.mxu0 %v756
      %v758 = vand.u32 %v399, 4294901760
      %v759 = vsub.f32 %v399, %v758
      %760 = vmatprep.subr.mxu0 %v759
      %v761 = vand.u32 %v397, 4294901760
      %v762 = vsub.f32 %v397, %v761
      %763 = vmatpush1.msra.mxu0 %v762
      %v764 = vand.u32 %v403, 4294901760
      %v765 = vsub.f32 %v403, %v764
      %766 = vmatprep.subr.mxu0 %v765
      %v767 = vand.u32 %v401, 4294901760
      %v768 = vsub.f32 %v401, %v767
      %769 = vmatpush1.msra.mxu0 %v768
      %v770 = vand.u32 %v407, 4294901760
      %v771 = vsub.f32 %v407, %v770
      %772 = vmatprep.subr.mxu0 %v771
      %v773 = vand.u32 %v405, 4294901760
      %v774 = vsub.f32 %v405, %v773
      %775 = vmatpush1.msra.mxu0 %v774
      %v776 = vand.u32 %v411, 4294901760
      %v777 = vsub.f32 %v411, %v776
      %778 = vmatprep.subr.mxu0 %v777
      %v779 = vand.u32 %v409, 4294901760
      %v780 = vsub.f32 %v409, %v779
      %781 = vmatpush1.msra.mxu0 %v780
      %v782 = vand.u32 %v415, 4294901760
      %v783 = vsub.f32 %v415, %v782
      %784 = vmatprep.subr.mxu0 %v783
      %v785 = vand.u32 %v413, 4294901760
      %v786 = vsub.f32 %v413, %v785
      %787 = vmatpush1.msra.mxu0 %v786
      %v788 = vand.u32 %v482, 4294901760
      %v789 = vsub.f32 %v482, %v788
      %790 = vmatprep.subr.mxu0 %v789
      %v791 = vand.u32 %v479, 4294901760
      %v792 = vsub.f32 %v479, %v791
      %793 = vmatpush1.msra.mxu0 %v792
      %794 = vmatprep.subr.mxu0 0.0
      %795 = vmatpush1.msra.mxu0 0.0
      %796 = vmatprep.subr.mxu0 0.0
      %797 = vmatpush1.msra.mxu0 0.0
      %798 = vmatprep.subr.mxu0 0.0
      %799 = vmatpush1.msra.mxu0 0.0
      %800 = vmatprep.subr.mxu0 0.0
      %801 = vmatpush1.msra.mxu0 0.0
      %802 = vmatprep.subr.mxu0 0.0
      %803 = vmatpush1.msra.mxu0 0.0
      %804 = vmatprep.subr.mxu0 0.0
      %805 = vmatpush1.msra.mxu0 0.0
      %806 = vmatprep.subr.mxu0 0.0
      %807 = vmatpush1.msra.mxu0 0.0
      %808 = vmatprep.subr.mxu0 0.0
      %809 = vmatpush1.msra.mxu0 0.0
      %810 = vmatprep.subr.mxu0 0.0
      %811 = vmatpush1.msra.mxu0 0.0
      %812 = vmatprep.subr.mxu0 0.0
      %813 = vmatpush1.msra.mxu0 0.0
      %814 = vmatprep.subr.mxu0 0.0
      %815 = vmatpush1.msra.mxu0 0.0
      %816 = vmatprep.subr.mxu0 0.0
      %817 = vmatpush1.msra.mxu0 0.0
      %818 = vmatprep.subr.mxu0 0.0
      %819 = vmatpush1.msra.mxu0 0.0
      %820 = vmatprep.subr.mxu0 0.0
      %821 = vmatpush1.msra.mxu0 0.0
      %822 = vmatprep.subr.mxu0 0.0
      %823 = vmatpush1.msra.mxu0 0.0
      %824 = vmatprep.subr.mxu0 0.0
      %825 = vmatpush1.msra.mxu0 0.0
      %826 = vmatprep.subr.mxu0 0.0
      %827 = vmatpush1.msra.mxu0 0.0
      %828 = vmatprep.subr.mxu0 0.0
      %829 = vmatpush1.msra.mxu0 0.0
      %830 = vmatprep.subr.mxu0 0.0
      %831 = vmatpush1.msra.mxu0 0.0
      %832 = vmatprep.subr.mxu0 0.0
      %833 = vmatpush1.msra.mxu0 0.0
      %834 = vmatprep.subr.mxu0 0.0
      %835 = vmatpush1.msra.mxu0 0.0
      %836 = vmatprep.subr.mxu0 0.0
      %837 = vmatpush1.msra.mxu0 0.0
      %838 = vmatprep.subr.mxu0 0.0
      %839 = vmatpush1.msra.mxu0 0.0
      %840 = vmatprep.mubr.f32.mxu0 0.0
      %v841 = vand.u32 %v476, 4294901760
      %v842 = vsub.f32 %v476, %v841
      %843 = vmatmul.mubr.f32.gmra.mrb[0].mxu0 %v842
      %v844 = vpop.f32.mrb[0].mxu0
      %v845 = vadd.f32 %v736, %v844
      %v846 = vpop.f32.mrb[0].mxu0
      %v847 = vadd.f32 %v738, %v846
      %848 = vdwg.mxu0
      %v849 = vand.u32 %v387, 4294901760
      %850 = vmatprep.subr.mxu0 %v849
      %v851 = vand.u32 %v385, 4294901760
      %852 = vmatpush1.msra.mxu0 %v851
      %v853 = vand.u32 %v391, 4294901760
      %854 = vmatprep.subr.mxu0 %v853
      %v855 = vand.u32 %v389, 4294901760
      %856 = vmatpush1.msra.mxu0 %v855
      %v857 = vand.u32 %v395, 4294901760
      %858 = vmatprep.subr.mxu0 %v857
      %v859 = vand.u32 %v393, 4294901760
      %860 = vmatpush1.msra.mxu0 %v859
      %v861 = vand.u32 %v399, 4294901760
      %862 = vmatprep.subr.mxu0 %v861
      %v863 = vand.u32 %v397, 4294901760
      %864 = vmatpush1.msra.mxu0 %v863
      %v865 = vand.u32 %v403, 4294901760
      %866 = vmatprep.subr.mxu0 %v865
      %v867 = vand.u32 %v401, 4294901760
      %868 = vmatpush1.msra.mxu0 %v867
      %v869 = vand.u32 %v407, 4294901760
      %870 = vmatprep.subr.mxu0 %v869
      %v871 = vand.u32 %v405, 4294901760
      %872 = vmatpush1.msra.mxu0 %v871
      %v873 = vand.u32 %v411, 4294901760
      %874 = vmatprep.subr.mxu0 %v873
      %v875 = vand.u32 %v409, 4294901760
      %876 = vmatpush1.msra.mxu0 %v875
      %v877 = vand.u32 %v415, 4294901760
      %878 = vmatprep.subr.mxu0 %v877
      %v879 = vand.u32 %v413, 4294901760
      %880 = vmatpush1.msra.mxu0 %v879
      %v881 = vand.u32 %v482, 4294901760
      %882 = vmatprep.subr.mxu0 %v881
      %v883 = vand.u32 %v479, 4294901760
      %884 = vmatpush1.msra.mxu0 %v883
      %885 = vmatprep.subr.mxu0 0.0
      %886 = vmatpush1.msra.mxu0 0.0
      %887 = vmatprep.subr.mxu0 0.0
      %888 = vmatpush1.msra.mxu0 0.0
      %889 = vmatprep.subr.mxu0 0.0
      %890 = vmatpush1.msra.mxu0 0.0
      %891 = vmatprep.subr.mxu0 0.0
      %892 = vmatpush1.msra.mxu0 0.0
      %893 = vmatprep.subr.mxu0 0.0
      %894 = vmatpush1.msra.mxu0 0.0
      %895 = vmatprep.subr.mxu0 0.0
      %896 = vmatpush1.msra.mxu0 0.0
      %897 = vmatprep.subr.mxu0 0.0
      %898 = vmatpush1.msra.mxu0 0.0
      %899 = vmatprep.subr.mxu0 0.0
      %900 = vmatpush1.msra.mxu0 0.0
      %901 = vmatprep.subr.mxu0 0.0
      %902 = vmatpush1.msra.mxu0 0.0
      %903 = vmatprep.subr.mxu0 0.0
      %904 = vmatpush1.msra.mxu0 0.0
      %905 = vmatprep.subr.mxu0 0.0
      %906 = vmatpush1.msra.mxu0 0.0
      %907 = vmatprep.subr.mxu0 0.0
      %908 = vmatpush1.msra.mxu0 0.0
      %909 = vmatprep.subr.mxu0 0.0
      %910 = vmatpush1.msra.mxu0 0.0
      %911 = vmatprep.subr.mxu0 0.0
      %912 = vmatpush1.msra.mxu0 0.0
      %913 = vmatprep.subr.mxu0 0.0
      %914 = vmatpush1.msra.mxu0 0.0
      %915 = vmatprep.subr.mxu0 0.0
      %916 = vmatpush1.msra.mxu0 0.0
      %917 = vmatprep.subr.mxu0 0.0
      %918 = vmatpush1.msra.mxu0 0.0
      %919 = vmatprep.subr.mxu0 0.0
      %920 = vmatpush1.msra.mxu0 0.0
      %921 = vmatprep.subr.mxu0 0.0
      %922 = vmatpush1.msra.mxu0 0.0
      %923 = vmatprep.subr.mxu0 0.0
      %924 = vmatpush1.msra.mxu0 0.0
      %925 = vmatprep.subr.mxu0 0.0
      %926 = vmatpush1.msra.mxu0 0.0
      %927 = vmatprep.subr.mxu0 0.0
      %928 = vmatpush1.msra.mxu0 0.0
      %929 = vmatprep.subr.mxu0 0.0
      %930 = vmatpush1.msra.mxu0 0.0
      %931 = vmatprep.mubr.f32.mxu0 0.0
      %v932 = vand.u32 %v476, 4294901760
      %v933 = vsub.f32 %v476, %v932
      %v934 = vand.u32 %v933, 4294901760
      %935 = vmatmul.mubr.f32.gmra.mrb[0].mxu0 %v934
      %v936 = vpop.f32.mrb[0].mxu0
      %v937 = vadd.f32 %v845, %v936
      %v938 = vpop.f32.mrb[0].mxu0
      %v939 = vadd.f32 %v847, %v938
      %940 = vdwg.mxu0
      %v941 = vand.u32 %v387, 4294901760
      %v942 = vsub.f32 %v387, %v941
      %v943 = vand.u32 %v942, 4294901760
      %944 = vmatprep.subr.mxu0 %v943
      %v945 = vand.u32 %v385, 4294901760
      %v946 = vsub.f32 %v385, %v945
      %v947 = vand.u32 %v946, 4294901760
      %948 = vmatpush1.msra.mxu0 %v947
      %v949 = vand.u32 %v391, 4294901760
      %v950 = vsub.f32 %v391, %v949
      %v951 = vand.u32 %v950, 4294901760
      %952 = vmatprep.subr.mxu0 %v951
      %v953 = vand.u32 %v389, 4294901760
      %v954 = vsub.f32 %v389, %v953
      %v955 = vand.u32 %v954, 4294901760
      %956 = vmatpush1.msra.mxu0 %v955
      %v957 = vand.u32 %v395, 4294901760
      %v958 = vsub.f32 %v395, %v957
      %v959 = vand.u32 %v958, 4294901760
      %960 = vmatprep.subr.mxu0 %v959
      %v961 = vand.u32 %v393, 4294901760
      %v962 = vsub.f32 %v393, %v961
      %v963 = vand.u32 %v962, 4294901760
      %964 = vmatpush1.msra.mxu0 %v963
      %v965 = vand.u32 %v399, 4294901760
      %v966 = vsub.f32 %v399, %v965
      %v967 = vand.u32 %v966, 4294901760
      %968 = vmatprep.subr.mxu0 %v967
      %v969 = vand.u32 %v397, 4294901760
      %v970 = vsub.f32 %v397, %v969
      %v971 = vand.u32 %v970, 4294901760
      %972 = vmatpush1.msra.mxu0 %v971
      %v973 = vand.u32 %v403, 4294901760
      %v974 = vsub.f32 %v403, %v973
      %v975 = vand.u32 %v974, 4294901760
      %976 = vmatprep.subr.mxu0 %v975
      %v977 = vand.u32 %v401, 4294901760
      %v978 = vsub.f32 %v401, %v977
      %v979 = vand.u32 %v978, 4294901760
      %980 = vmatpush1.msra.mxu0 %v979
      %v981 = vand.u32 %v407, 4294901760
      %v982 = vsub.f32 %v407, %v981
      %v983 = vand.u32 %v982, 4294901760
      %984 = vmatprep.subr.mxu0 %v983
      %v985 = vand.u32 %v405, 4294901760
      %v986 = vsub.f32 %v405, %v985
      %v987 = vand.u32 %v986, 4294901760
      %988 = vmatpush1.msra.mxu0 %v987
      %v989 = vand.u32 %v411, 4294901760
      %v990 = vsub.f32 %v411, %v989
      %v991 = vand.u32 %v990, 4294901760
      %992 = vmatprep.subr.mxu0 %v991
      %v993 = vand.u32 %v409, 4294901760
      %v994 = vsub.f32 %v409, %v993
      %v995 = vand.u32 %v994, 4294901760
      %996 = vmatpush1.msra.mxu0 %v995
      %v997 = vand.u32 %v415, 4294901760
      %v998 = vsub.f32 %v415, %v997
      %v999 = vand.u32 %v998, 4294901760
      %1000 = vmatprep.subr.mxu0 %v999
      %v1001 = vand.u32 %v413, 4294901760
      %v1002 = vsub.f32 %v413, %v1001
      %v1003 = vand.u32 %v1002, 4294901760
      %1004 = vmatpush1.msra.mxu0 %v1003
      %v1005 = vand.u32 %v482, 4294901760
      %v1006 = vsub.f32 %v482, %v1005
      %v1007 = vand.u32 %v1006, 4294901760
      %1008 = vmatprep.subr.mxu0 %v1007
      %v1009 = vand.u32 %v479, 4294901760
      %v1010 = vsub.f32 %v479, %v1009
      %v1011 = vand.u32 %v1010, 4294901760
      %1012 = vmatpush1.msra.mxu0 %v1011
      %1013 = vmatprep.subr.mxu0 0.0
      %1014 = vmatpush1.msra.mxu0 0.0
      %1015 = vmatprep.subr.mxu0 0.0
      %1016 = vmatpush1.msra.mxu0 0.0
      %1017 = vmatprep.subr.mxu0 0.0
      %1018 = vmatpush1.msra.mxu0 0.0
      %1019 = vmatprep.subr.mxu0 0.0
      %1020 = vmatpush1.msra.mxu0 0.0
      %1021 = vmatprep.subr.mxu0 0.0
      %1022 = vmatpush1.msra.mxu0 0.0
      %1023 = vmatprep.subr.mxu0 0.0
      %1024 = vmatpush1.msra.mxu0 0.0
      %1025 = vmatprep.subr.mxu0 0.0
      %1026 = vmatpush1.msra.mxu0 0.0
      %1027 = vmatprep.subr.mxu0 0.0
      %1028 = vmatpush1.msra.mxu0 0.0
      %1029 = vmatprep.subr.mxu0 0.0
      %1030 = vmatpush1.msra.mxu0 0.0
      %1031 = vmatprep.subr.mxu0 0.0
      %1032 = vmatpush1.msra.mxu0 0.0
      %1033 = vmatprep.subr.mxu0 0.0
      %1034 = vmatpush1.msra.mxu0 0.0
      %1035 = vmatprep.subr.mxu0 0.0
      %1036 = vmatpush1.msra.mxu0 0.0
      %1037 = vmatprep.subr.mxu0 0.0
      %1038 = vmatpush1.msra.mxu0 0.0
      %1039 = vmatprep.subr.mxu0 0.0
      %1040 = vmatpush1.msra.mxu0 0.0
      %1041 = vmatprep.subr.mxu0 0.0
      %1042 = vmatpush1.msra.mxu0 0.0
      %1043 = vmatprep.subr.mxu0 0.0
      %1044 = vmatpush1.msra.mxu0 0.0
      %1045 = vmatprep.subr.mxu0 0.0
      %1046 = vmatpush1.msra.mxu0 0.0
      %1047 = vmatprep.subr.mxu0 0.0
      %1048 = vmatpush1.msra.mxu0 0.0
      %1049 = vmatprep.subr.mxu0 0.0
      %1050 = vmatpush1.msra.mxu0 0.0
      %1051 = vmatprep.subr.mxu0 0.0
      %1052 = vmatpush1.msra.mxu0 0.0
      %1053 = vmatprep.subr.mxu0 0.0
      %1054 = vmatpush1.msra.mxu0 0.0
      %1055 = vmatprep.subr.mxu0 0.0
      %1056 = vmatpush1.msra.mxu0 0.0
      %1057 = vmatprep.subr.mxu0 0.0
      %1058 = vmatpush1.msra.mxu0 0.0
      %1059 = vmatprep.mubr.f32.mxu0 0.0
      %v1060 = vand.u32 %v476, 4294901760
      %1061 = vmatmul.mubr.f32.gmra.mrb[0].mxu0 %v1060
      %v1062 = vpop.f32.mrb[0].mxu0
      %v1063 = vadd.f32 %v937, %v1062
      %v1064 = vpop.f32.mrb[0].mxu0
      %v1065 = vadd.f32 %v939, %v1064
      %1066 = vdwg.mxu0
      %v1067 = vand.u32 %v387, 4294901760
      %1068 = vmatprep.subr.mxu0 %v1067
      %v1069 = vand.u32 %v385, 4294901760
      %1070 = vmatpush1.msra.mxu0 %v1069
      %v1071 = vand.u32 %v391, 4294901760
      %1072 = vmatprep.subr.mxu0 %v1071
      %v1073 = vand.u32 %v389, 4294901760
      %1074 = vmatpush1.msra.mxu0 %v1073
      %v1075 = vand.u32 %v395, 4294901760
      %1076 = vmatprep.subr.mxu0 %v1075
      %v1077 = vand.u32 %v393, 4294901760
      %1078 = vmatpush1.msra.mxu0 %v1077
      %v1079 = vand.u32 %v399, 4294901760
      %1080 = vmatprep.subr.mxu0 %v1079
      %v1081 = vand.u32 %v397, 4294901760
      %1082 = vmatpush1.msra.mxu0 %v1081
      %v1083 = vand.u32 %v403, 4294901760
      %1084 = vmatprep.subr.mxu0 %v1083
      %v1085 = vand.u32 %v401, 4294901760
      %1086 = vmatpush1.msra.mxu0 %v1085
      %v1087 = vand.u32 %v407, 4294901760
      %1088 = vmatprep.subr.mxu0 %v1087
      %v1089 = vand.u32 %v405, 4294901760
      %1090 = vmatpush1.msra.mxu0 %v1089
      %v1091 = vand.u32 %v411, 4294901760
      %1092 = vmatprep.subr.mxu0 %v1091
      %v1093 = vand.u32 %v409, 4294901760
      %1094 = vmatpush1.msra.mxu0 %v1093
      %v1095 = vand.u32 %v415, 4294901760
      %1096 = vmatprep.subr.mxu0 %v1095
      %v1097 = vand.u32 %v413, 4294901760
      %1098 = vmatpush1.msra.mxu0 %v1097
      %v1099 = vand.u32 %v482, 4294901760
      %1100 = vmatprep.subr.mxu0 %v1099
      %v1101 = vand.u32 %v479, 4294901760
      %1102 = vmatpush1.msra.mxu0 %v1101
      %1103 = vmatprep.subr.mxu0 0.0
      %1104 = vmatpush1.msra.mxu0 0.0
      %1105 = vmatprep.subr.mxu0 0.0
      %1106 = vmatpush1.msra.mxu0 0.0
      %1107 = vmatprep.subr.mxu0 0.0
      %1108 = vmatpush1.msra.mxu0 0.0
      %1109 = vmatprep.subr.mxu0 0.0
      %1110 = vmatpush1.msra.mxu0 0.0
      %1111 = vmatprep.subr.mxu0 0.0
      %1112 = vmatpush1.msra.mxu0 0.0
      %1113 = vmatprep.subr.mxu0 0.0
      %1114 = vmatpush1.msra.mxu0 0.0
      %1115 = vmatprep.subr.mxu0 0.0
      %1116 = vmatpush1.msra.mxu0 0.0
      %1117 = vmatprep.subr.mxu0 0.0
      %1118 = vmatpush1.msra.mxu0 0.0
      %1119 = vmatprep.subr.mxu0 0.0
      %1120 = vmatpush1.msra.mxu0 0.0
      %1121 = vmatprep.subr.mxu0 0.0
      %1122 = vmatpush1.msra.mxu0 0.0
      %1123 = vmatprep.subr.mxu0 0.0
      %1124 = vmatpush1.msra.mxu0 0.0
      %1125 = vmatprep.subr.mxu0 0.0
      %1126 = vmatpush1.msra.mxu0 0.0
      %1127 = vmatprep.subr.mxu0 0.0
      %1128 = vmatpush1.msra.mxu0 0.0
      %1129 = vmatprep.subr.mxu0 0.0
      %1130 = vmatpush1.msra.mxu0 0.0
      %1131 = vmatprep.subr.mxu0 0.0
      %1132 = vmatpush1.msra.mxu0 0.0
      %1133 = vmatprep.subr.mxu0 0.0
      %1134 = vmatpush1.msra.mxu0 0.0
      %1135 = vmatprep.subr.mxu0 0.0
      %1136 = vmatpush1.msra.mxu0 0.0
      %1137 = vmatprep.subr.mxu0 0.0
      %1138 = vmatpush1.msra.mxu0 0.0
      %1139 = vmatprep.subr.mxu0 0.0
      %1140 = vmatpush1.msra.mxu0 0.0
      %1141 = vmatprep.subr.mxu0 0.0
      %1142 = vmatpush1.msra.mxu0 0.0
      %1143 = vmatprep.subr.mxu0 0.0
      %1144 = vmatpush1.msra.mxu0 0.0
      %1145 = vmatprep.subr.mxu0 0.0
      %1146 = vmatpush1.msra.mxu0 0.0
      %1147 = vmatprep.subr.mxu0 0.0
      %1148 = vmatpush1.msra.mxu0 0.0
      %1149 = vmatprep.mubr.f32.mxu0 0.0
      %v1150 = vand.u32 %v476, 4294901760
      %1151 = vmatmul.mubr.f32.gmra.mrb[0].mxu0 %v1150
      %v1152 = vpop.f32.mrb[0].mxu0
      %v1153 = vadd.f32 %v1063, %v1152
      %v1154 = vpop.f32.mrb[0].mxu0
      %v1155 = vadd.f32 %v1065, %v1154
      %1156 = vdwg.mxu0
      %v1158 = vsel %vm341, %v472, 0
      %v1161 = vsel %vm341, %v473, 0
      %v1163 = vand.u32 %v457, 4294901760
      %1164 = vmatprep.subr.mxu0 %v1163
      %v1165 = vand.u32 %v456, 4294901760
      %1166 = vmatpush1.msra.mxu0 %v1165
      %v1167 = vand.u32 %v459, 4294901760
      %1168 = vmatprep.subr.mxu0 %v1167
      %v1169 = vand.u32 %v458, 4294901760
      %1170 = vmatpush1.msra.mxu0 %v1169
      %v1171 = vand.u32 %v461, 4294901760
      %1172 = vmatprep.subr.mxu0 %v1171
      %v1173 = vand.u32 %v460, 4294901760
      %1174 = vmatpush1.msra.mxu0 %v1173
      %v1175 = vand.u32 %v463, 4294901760
      %1176 = vmatprep.subr.mxu0 %v1175
      %v1177 = vand.u32 %v462, 4294901760
      %1178 = vmatpush1.msra.mxu0 %v1177
      %v1179 = vand.u32 %v465, 4294901760
      %1180 = vmatprep.subr.mxu0 %v1179
      %v1181 = vand.u32 %v464, 4294901760
      %1182 = vmatpush1.msra.mxu0 %v1181
      %v1183 = vand.u32 %v467, 4294901760
      %1184 = vmatprep.subr.mxu0 %v1183
      %v1185 = vand.u32 %v466, 4294901760
      %1186 = vmatpush1.msra.mxu0 %v1185
      %v1187 = vand.u32 %v469, 4294901760
      %1188 = vmatprep.subr.mxu0 %v1187
      %v1189 = vand.u32 %v468, 4294901760
      %1190 = vmatpush1.msra.mxu0 %v1189
      %v1191 = vand.u32 %v471, 4294901760
      %1192 = vmatprep.subr.mxu0 %v1191
      %v1193 = vand.u32 %v470, 4294901760
      %1194 = vmatpush1.msra.mxu0 %v1193
      %v1195 = vand.u32 %v1161, 4294901760
      %1196 = vmatprep.subr.mxu0 %v1195
      %v1197 = vand.u32 %v1158, 4294901760
      %1198 = vmatpush1.msra.mxu0 %v1197
      %1199 = vmatprep.subr.mxu0 0.0
      %1200 = vmatpush1.msra.mxu0 0.0
      %1201 = vmatprep.subr.mxu0 0.0
      %1202 = vmatpush1.msra.mxu0 0.0
      %1203 = vmatprep.subr.mxu0 0.0
      %1204 = vmatpush1.msra.mxu0 0.0
      %1205 = vmatprep.subr.mxu0 0.0
      %1206 = vmatpush1.msra.mxu0 0.0
      %1207 = vmatprep.subr.mxu0 0.0
      %1208 = vmatpush1.msra.mxu0 0.0
      %1209 = vmatprep.subr.mxu0 0.0
      %1210 = vmatpush1.msra.mxu0 0.0
      %1211 = vmatprep.subr.mxu0 0.0
      %1212 = vmatpush1.msra.mxu0 0.0
      %1213 = vmatprep.subr.mxu0 0.0
      %1214 = vmatpush1.msra.mxu0 0.0
      %1215 = vmatprep.subr.mxu0 0.0
      %1216 = vmatpush1.msra.mxu0 0.0
      %1217 = vmatprep.subr.mxu0 0.0
      %1218 = vmatpush1.msra.mxu0 0.0
      %1219 = vmatprep.subr.mxu0 0.0
      %1220 = vmatpush1.msra.mxu0 0.0
      %1221 = vmatprep.subr.mxu0 0.0
      %1222 = vmatpush1.msra.mxu0 0.0
      %1223 = vmatprep.subr.mxu0 0.0
      %1224 = vmatpush1.msra.mxu0 0.0
      %1225 = vmatprep.subr.mxu0 0.0
      %1226 = vmatpush1.msra.mxu0 0.0
      %1227 = vmatprep.subr.mxu0 0.0
      %1228 = vmatpush1.msra.mxu0 0.0
      %1229 = vmatprep.subr.mxu0 0.0
      %1230 = vmatpush1.msra.mxu0 0.0
      %1231 = vmatprep.subr.mxu0 0.0
      %1232 = vmatpush1.msra.mxu0 0.0
      %1233 = vmatprep.subr.mxu0 0.0
      %1234 = vmatpush1.msra.mxu0 0.0
      %1235 = vmatprep.subr.mxu0 0.0
      %1236 = vmatpush1.msra.mxu0 0.0
      %1237 = vmatprep.subr.mxu0 0.0
      %1238 = vmatpush1.msra.mxu0 0.0
      %1239 = vmatprep.subr.mxu0 0.0
      %1240 = vmatpush1.msra.mxu0 0.0
      %1241 = vmatprep.subr.mxu0 0.0
      %1242 = vmatpush1.msra.mxu0 0.0
      %1243 = vmatprep.subr.mxu0 0.0
      %1244 = vmatpush1.msra.mxu0 0.0
      %1245 = vmatprep.mubr.f32.mxu0 0.0
      %v1246 = vand.u32 %v476, 4294901760
      %v1247 = vsub.f32 %v476, %v1246
      %v1248 = vand.u32 %v1247, 4294901760
      %v1249 = vsub.f32 %v1247, %v1248
      %v1250 = vand.u32 %v1249, 4294901760
      %1251 = vmatmul.mubr.f32.gmra.mrb[0].mxu0 %v1250
      %v1252 = vpop.f32.mrb[0].mxu0
      %v1253 = vadd.f32 0.0, %v1252
      %v1254 = vpop.f32.mrb[0].mxu0
      %v1255 = vadd.f32 0.0, %v1254
      %1256 = vdwg.mxu0
      %v1257 = vand.u32 %v457, 4294901760
      %v1258 = vsub.f32 %v457, %v1257
      %v1259 = vand.u32 %v1258, 4294901760
      %v1260 = vsub.f32 %v1258, %v1259
      %v1261 = vand.u32 %v1260, 4294901760
      %1262 = vmatprep.subr.mxu0 %v1261
      %v1263 = vand.u32 %v456, 4294901760
      %v1264 = vsub.f32 %v456, %v1263
      %v1265 = vand.u32 %v1264, 4294901760
      %v1266 = vsub.f32 %v1264, %v1265
      %v1267 = vand.u32 %v1266, 4294901760
      %1268 = vmatpush1.msra.mxu0 %v1267
      %v1269 = vand.u32 %v459, 4294901760
      %v1270 = vsub.f32 %v459, %v1269
      %v1271 = vand.u32 %v1270, 4294901760
      %v1272 = vsub.f32 %v1270, %v1271
      %v1273 = vand.u32 %v1272, 4294901760
      %1274 = vmatprep.subr.mxu0 %v1273
      %v1275 = vand.u32 %v458, 4294901760
      %v1276 = vsub.f32 %v458, %v1275
      %v1277 = vand.u32 %v1276, 4294901760
      %v1278 = vsub.f32 %v1276, %v1277
      %v1279 = vand.u32 %v1278, 4294901760
      %1280 = vmatpush1.msra.mxu0 %v1279
      %v1281 = vand.u32 %v461, 4294901760
      %v1282 = vsub.f32 %v461, %v1281
      %v1283 = vand.u32 %v1282, 4294901760
      %v1284 = vsub.f32 %v1282, %v1283
      %v1285 = vand.u32 %v1284, 4294901760
      %1286 = vmatprep.subr.mxu0 %v1285
      %v1287 = vand.u32 %v460, 4294901760
      %v1288 = vsub.f32 %v460, %v1287
      %v1289 = vand.u32 %v1288, 4294901760
      %v1290 = vsub.f32 %v1288, %v1289
      %v1291 = vand.u32 %v1290, 4294901760
      %1292 = vmatpush1.msra.mxu0 %v1291
      %v1293 = vand.u32 %v463, 4294901760
      %v1294 = vsub.f32 %v463, %v1293
      %v1295 = vand.u32 %v1294, 4294901760
      %v1296 = vsub.f32 %v1294, %v1295
      %v1297 = vand.u32 %v1296, 4294901760
      %1298 = vmatprep.subr.mxu0 %v1297
      %v1299 = vand.u32 %v462, 4294901760
      %v1300 = vsub.f32 %v462, %v1299
      %v1301 = vand.u32 %v1300, 4294901760
      %v1302 = vsub.f32 %v1300, %v1301
      %v1303 = vand.u32 %v1302, 4294901760
      %1304 = vmatpush1.msra.mxu0 %v1303
      %v1305 = vand.u32 %v465, 4294901760
      %v1306 = vsub.f32 %v465, %v1305
      %v1307 = vand.u32 %v1306, 4294901760
      %v1308 = vsub.f32 %v1306, %v1307
      %v1309 = vand.u32 %v1308, 4294901760
      %1310 = vmatprep.subr.mxu0 %v1309
      %v1311 = vand.u32 %v464, 4294901760
      %v1312 = vsub.f32 %v464, %v1311
      %v1313 = vand.u32 %v1312, 4294901760
      %v1314 = vsub.f32 %v1312, %v1313
      %v1315 = vand.u32 %v1314, 4294901760
      %1316 = vmatpush1.msra.mxu0 %v1315
      %v1317 = vand.u32 %v467, 4294901760
      %v1318 = vsub.f32 %v467, %v1317
      %v1319 = vand.u32 %v1318, 4294901760
      %v1320 = vsub.f32 %v1318, %v1319
      %v1321 = vand.u32 %v1320, 4294901760
      %1322 = vmatprep.subr.mxu0 %v1321
      %v1323 = vand.u32 %v466, 4294901760
      %v1324 = vsub.f32 %v466, %v1323
      %v1325 = vand.u32 %v1324, 4294901760
      %v1326 = vsub.f32 %v1324, %v1325
      %v1327 = vand.u32 %v1326, 4294901760
      %1328 = vmatpush1.msra.mxu0 %v1327
      %v1329 = vand.u32 %v469, 4294901760
      %v1330 = vsub.f32 %v469, %v1329
      %v1331 = vand.u32 %v1330, 4294901760
      %v1332 = vsub.f32 %v1330, %v1331
      %v1333 = vand.u32 %v1332, 4294901760
      %1334 = vmatprep.subr.mxu0 %v1333
      %v1335 = vand.u32 %v468, 4294901760
      %v1336 = vsub.f32 %v468, %v1335
      %v1337 = vand.u32 %v1336, 4294901760
      %v1338 = vsub.f32 %v1336, %v1337
      %v1339 = vand.u32 %v1338, 4294901760
      %1340 = vmatpush1.msra.mxu0 %v1339
      %v1341 = vand.u32 %v471, 4294901760
      %v1342 = vsub.f32 %v471, %v1341
      %v1343 = vand.u32 %v1342, 4294901760
      %v1344 = vsub.f32 %v1342, %v1343
      %v1345 = vand.u32 %v1344, 4294901760
      %1346 = vmatprep.subr.mxu0 %v1345
      %v1347 = vand.u32 %v470, 4294901760
      %v1348 = vsub.f32 %v470, %v1347
      %v1349 = vand.u32 %v1348, 4294901760
      %v1350 = vsub.f32 %v1348, %v1349
      %v1351 = vand.u32 %v1350, 4294901760
      %1352 = vmatpush1.msra.mxu0 %v1351
      %v1353 = vand.u32 %v1161, 4294901760
      %v1354 = vsub.f32 %v1161, %v1353
      %v1355 = vand.u32 %v1354, 4294901760
      %v1356 = vsub.f32 %v1354, %v1355
      %v1357 = vand.u32 %v1356, 4294901760
      %1358 = vmatprep.subr.mxu0 %v1357
      %v1359 = vand.u32 %v1158, 4294901760
      %v1360 = vsub.f32 %v1158, %v1359
      %v1361 = vand.u32 %v1360, 4294901760
      %v1362 = vsub.f32 %v1360, %v1361
      %v1363 = vand.u32 %v1362, 4294901760
      %1364 = vmatpush1.msra.mxu0 %v1363
      %1365 = vmatprep.subr.mxu0 0.0
      %1366 = vmatpush1.msra.mxu0 0.0
      %1367 = vmatprep.subr.mxu0 0.0
      %1368 = vmatpush1.msra.mxu0 0.0
      %1369 = vmatprep.subr.mxu0 0.0
      %1370 = vmatpush1.msra.mxu0 0.0
      %1371 = vmatprep.subr.mxu0 0.0
      %1372 = vmatpush1.msra.mxu0 0.0
      %1373 = vmatprep.subr.mxu0 0.0
      %1374 = vmatpush1.msra.mxu0 0.0
      %1375 = vmatprep.subr.mxu0 0.0
      %1376 = vmatpush1.msra.mxu0 0.0
      %1377 = vmatprep.subr.mxu0 0.0
      %1378 = vmatpush1.msra.mxu0 0.0
      %1379 = vmatprep.subr.mxu0 0.0
      %1380 = vmatpush1.msra.mxu0 0.0
      %1381 = vmatprep.subr.mxu0 0.0
      %1382 = vmatpush1.msra.mxu0 0.0
      %1383 = vmatprep.subr.mxu0 0.0
      %1384 = vmatpush1.msra.mxu0 0.0
      %1385 = vmatprep.subr.mxu0 0.0
      %1386 = vmatpush1.msra.mxu0 0.0
      %1387 = vmatprep.subr.mxu0 0.0
      %1388 = vmatpush1.msra.mxu0 0.0
      %1389 = vmatprep.subr.mxu0 0.0
      %1390 = vmatpush1.msra.mxu0 0.0
      %1391 = vmatprep.subr.mxu0 0.0
      %1392 = vmatpush1.msra.mxu0 0.0
      %1393 = vmatprep.subr.mxu0 0.0
      %1394 = vmatpush1.msra.mxu0 0.0
      %1395 = vmatprep.subr.mxu0 0.0
      %1396 = vmatpush1.msra.mxu0 0.0
      %1397 = vmatprep.subr.mxu0 0.0
      %1398 = vmatpush1.msra.mxu0 0.0
      %1399 = vmatprep.subr.mxu0 0.0
      %1400 = vmatpush1.msra.mxu0 0.0
      %1401 = vmatprep.subr.mxu0 0.0
      %1402 = vmatpush1.msra.mxu0 0.0
      %1403 = vmatprep.subr.mxu0 0.0
      %1404 = vmatpush1.msra.mxu0 0.0
      %1405 = vmatprep.subr.mxu0 0.0
      %1406 = vmatpush1.msra.mxu0 0.0
      %1407 = vmatprep.subr.mxu0 0.0
      %1408 = vmatpush1.msra.mxu0 0.0
      %1409 = vmatprep.subr.mxu0 0.0
      %1410 = vmatpush1.msra.mxu0 0.0
      %1411 = vmatprep.mubr.f32.mxu0 0.0
      %v1412 = vand.u32 %v476, 4294901760
      %1413 = vmatmul.mubr.f32.gmra.mrb[0].mxu0 %v1412
      %v1414 = vpop.f32.mrb[0].mxu0
      %v1415 = vadd.f32 %v1253, %v1414
      %v1416 = vpop.f32.mrb[0].mxu0
      %v1417 = vadd.f32 %v1255, %v1416
      %1418 = vdwg.mxu0
      %v1419 = vand.u32 %v457, 4294901760
      %v1420 = vsub.f32 %v457, %v1419
      %1421 = vmatprep.subr.mxu0 %v1420
      %v1422 = vand.u32 %v456, 4294901760
      %v1423 = vsub.f32 %v456, %v1422
      %1424 = vmatpush1.msra.mxu0 %v1423
      %v1425 = vand.u32 %v459, 4294901760
      %v1426 = vsub.f32 %v459, %v1425
      %1427 = vmatprep.subr.mxu0 %v1426
      %v1428 = vand.u32 %v458, 4294901760
      %v1429 = vsub.f32 %v458, %v1428
      %1430 = vmatpush1.msra.mxu0 %v1429
      %v1431 = vand.u32 %v461, 4294901760
      %v1432 = vsub.f32 %v461, %v1431
      %1433 = vmatprep.subr.mxu0 %v1432
      %v1434 = vand.u32 %v460, 4294901760
      %v1435 = vsub.f32 %v460, %v1434
      %1436 = vmatpush1.msra.mxu0 %v1435
      %v1437 = vand.u32 %v463, 4294901760
      %v1438 = vsub.f32 %v463, %v1437
      %1439 = vmatprep.subr.mxu0 %v1438
      %v1440 = vand.u32 %v462, 4294901760
      %v1441 = vsub.f32 %v462, %v1440
      %1442 = vmatpush1.msra.mxu0 %v1441
      %v1443 = vand.u32 %v465, 4294901760
      %v1444 = vsub.f32 %v465, %v1443
      %1445 = vmatprep.subr.mxu0 %v1444
      %v1446 = vand.u32 %v464, 4294901760
      %v1447 = vsub.f32 %v464, %v1446
      %1448 = vmatpush1.msra.mxu0 %v1447
      %v1449 = vand.u32 %v467, 4294901760
      %v1450 = vsub.f32 %v467, %v1449
      %1451 = vmatprep.subr.mxu0 %v1450
      %v1452 = vand.u32 %v466, 4294901760
      %v1453 = vsub.f32 %v466, %v1452
      %1454 = vmatpush1.msra.mxu0 %v1453
      %v1455 = vand.u32 %v469, 4294901760
      %v1456 = vsub.f32 %v469, %v1455
      %1457 = vmatprep.subr.mxu0 %v1456
      %v1458 = vand.u32 %v468, 4294901760
      %v1459 = vsub.f32 %v468, %v1458
      %1460 = vmatpush1.msra.mxu0 %v1459
      %v1461 = vand.u32 %v471, 4294901760
      %v1462 = vsub.f32 %v471, %v1461
      %1463 = vmatprep.subr.mxu0 %v1462
      %v1464 = vand.u32 %v470, 4294901760
      %v1465 = vsub.f32 %v470, %v1464
      %1466 = vmatpush1.msra.mxu0 %v1465
      %v1467 = vand.u32 %v1161, 4294901760
      %v1468 = vsub.f32 %v1161, %v1467
      %1469 = vmatprep.subr.mxu0 %v1468
      %v1470 = vand.u32 %v1158, 4294901760
      %v1471 = vsub.f32 %v1158, %v1470
      %1472 = vmatpush1.msra.mxu0 %v1471
      %1473 = vmatprep.subr.mxu0 0.0
      %1474 = vmatpush1.msra.mxu0 0.0
      %1475 = vmatprep.subr.mxu0 0.0
      %1476 = vmatpush1.msra.mxu0 0.0
      %1477 = vmatprep.subr.mxu0 0.0
      %1478 = vmatpush1.msra.mxu0 0.0
      %1479 = vmatprep.subr.mxu0 0.0
      %1480 = vmatpush1.msra.mxu0 0.0
      %1481 = vmatprep.subr.mxu0 0.0
      %1482 = vmatpush1.msra.mxu0 0.0
      %1483 = vmatprep.subr.mxu0 0.0
      %1484 = vmatpush1.msra.mxu0 0.0
      %1485 = vmatprep.subr.mxu0 0.0
      %1486 = vmatpush1.msra.mxu0 0.0
      %1487 = vmatprep.subr.mxu0 0.0
      %1488 = vmatpush1.msra.mxu0 0.0
      %1489 = vmatprep.subr.mxu0 0.0
      %1490 = vmatpush1.msra.mxu0 0.0
      %1491 = vmatprep.subr.mxu0 0.0
      %1492 = vmatpush1.msra.mxu0 0.0
      %1493 = vmatprep.subr.mxu0 0.0
      %1494 = vmatpush1.msra.mxu0 0.0
      %1495 = vmatprep.subr.mxu0 0.0
      %1496 = vmatpush1.msra.mxu0 0.0
      %1497 = vmatprep.subr.mxu0 0.0
      %1498 = vmatpush1.msra.mxu0 0.0
      %1499 = vmatprep.subr.mxu0 0.0
      %1500 = vmatpush1.msra.mxu0 0.0
      %1501 = vmatprep.subr.mxu0 0.0
      %1502 = vmatpush1.msra.mxu0 0.0
      %1503 = vmatprep.subr.mxu0 0.0
      %1504 = vmatpush1.msra.mxu0 0.0
      %1505 = vmatprep.subr.mxu0 0.0
      %1506 = vmatpush1.msra.mxu0 0.0
      %1507 = vmatprep.subr.mxu0 0.0
      %1508 = vmatpush1.msra.mxu0 0.0
      %1509 = vmatprep.subr.mxu0 0.0
      %1510 = vmatpush1.msra.mxu0 0.0
      %1511 = vmatprep.subr.mxu0 0.0
      %1512 = vmatpush1.msra.mxu0 0.0
      %1513 = vmatprep.subr.mxu0 0.0
      %1514 = vmatpush1.msra.mxu0 0.0
      %1515 = vmatprep.subr.mxu0 0.0
      %1516 = vmatpush1.msra.mxu0 0.0
      %1517 = vmatprep.subr.mxu0 0.0
      %1518 = vmatpush1.msra.mxu0 0.0
      %1519 = vmatprep.mubr.f32.mxu0 0.0
      %v1520 = vand.u32 %v476, 4294901760
      %v1521 = vsub.f32 %v476, %v1520
      %1522 = vmatmul.mubr.f32.gmra.mrb[0].mxu0 %v1521
      %v1523 = vpop.f32.mrb[0].mxu0
      %v1524 = vadd.f32 %v1415, %v1523
      %v1525 = vpop.f32.mrb[0].mxu0
      %v1526 = vadd.f32 %v1417, %v1525
      %1527 = vdwg.mxu0
      %v1528 = vand.u32 %v457, 4294901760
      %1529 = vmatprep.subr.mxu0 %v1528
      %v1530 = vand.u32 %v456, 4294901760
      %1531 = vmatpush1.msra.mxu0 %v1530
      %v1532 = vand.u32 %v459, 4294901760
      %1533 = vmatprep.subr.mxu0 %v1532
      %v1534 = vand.u32 %v458, 4294901760
      %1535 = vmatpush1.msra.mxu0 %v1534
      %v1536 = vand.u32 %v461, 4294901760
      %1537 = vmatprep.subr.mxu0 %v1536
      %v1538 = vand.u32 %v460, 4294901760
      %1539 = vmatpush1.msra.mxu0 %v1538
      %v1540 = vand.u32 %v463, 4294901760
      %1541 = vmatprep.subr.mxu0 %v1540
      %v1542 = vand.u32 %v462, 4294901760
      %1543 = vmatpush1.msra.mxu0 %v1542
      %v1544 = vand.u32 %v465, 4294901760
      %1545 = vmatprep.subr.mxu0 %v1544
      %v1546 = vand.u32 %v464, 4294901760
      %1547 = vmatpush1.msra.mxu0 %v1546
      %v1548 = vand.u32 %v467, 4294901760
      %1549 = vmatprep.subr.mxu0 %v1548
      %v1550 = vand.u32 %v466, 4294901760
      %1551 = vmatpush1.msra.mxu0 %v1550
      %v1552 = vand.u32 %v469, 4294901760
      %1553 = vmatprep.subr.mxu0 %v1552
      %v1554 = vand.u32 %v468, 4294901760
      %1555 = vmatpush1.msra.mxu0 %v1554
      %v1556 = vand.u32 %v471, 4294901760
      %1557 = vmatprep.subr.mxu0 %v1556
      %v1558 = vand.u32 %v470, 4294901760
      %1559 = vmatpush1.msra.mxu0 %v1558
      %v1560 = vand.u32 %v1161, 4294901760
      %1561 = vmatprep.subr.mxu0 %v1560
      %v1562 = vand.u32 %v1158, 4294901760
      %1563 = vmatpush1.msra.mxu0 %v1562
      %1564 = vmatprep.subr.mxu0 0.0
      %1565 = vmatpush1.msra.mxu0 0.0
      %1566 = vmatprep.subr.mxu0 0.0
      %1567 = vmatpush1.msra.mxu0 0.0
      %1568 = vmatprep.subr.mxu0 0.0
      %1569 = vmatpush1.msra.mxu0 0.0
      %1570 = vmatprep.subr.mxu0 0.0
      %1571 = vmatpush1.msra.mxu0 0.0
      %1572 = vmatprep.subr.mxu0 0.0
      %1573 = vmatpush1.msra.mxu0 0.0
      %1574 = vmatprep.subr.mxu0 0.0
      %1575 = vmatpush1.msra.mxu0 0.0
      %1576 = vmatprep.subr.mxu0 0.0
      %1577 = vmatpush1.msra.mxu0 0.0
      %1578 = vmatprep.subr.mxu0 0.0
      %1579 = vmatpush1.msra.mxu0 0.0
      %1580 = vmatprep.subr.mxu0 0.0
      %1581 = vmatpush1.msra.mxu0 0.0
      %1582 = vmatprep.subr.mxu0 0.0
      %1583 = vmatpush1.msra.mxu0 0.0
      %1584 = vmatprep.subr.mxu0 0.0
      %1585 = vmatpush1.msra.mxu0 0.0
      %1586 = vmatprep.subr.mxu0 0.0
      %1587 = vmatpush1.msra.mxu0 0.0
      %1588 = vmatprep.subr.mxu0 0.0
      %1589 = vmatpush1.msra.mxu0 0.0
      %1590 = vmatprep.subr.mxu0 0.0
      %1591 = vmatpush1.msra.mxu0 0.0
      %1592 = vmatprep.subr.mxu0 0.0
      %1593 = vmatpush1.msra.mxu0 0.0
      %1594 = vmatprep.subr.mxu0 0.0
      %1595 = vmatpush1.msra.mxu0 0.0
      %1596 = vmatprep.subr.mxu0 0.0
      %1597 = vmatpush1.msra.mxu0 0.0
      %1598 = vmatprep.subr.mxu0 0.0
      %1599 = vmatpush1.msra.mxu0 0.0
      %1600 = vmatprep.subr.mxu0 0.0
      %1601 = vmatpush1.msra.mxu0 0.0
      %1602 = vmatprep.subr.mxu0 0.0
      %1603 = vmatpush1.msra.mxu0 0.0
      %1604 = vmatprep.subr.mxu0 0.0
      %1605 = vmatpush1.msra.mxu0 0.0
      %1606 = vmatprep.subr.mxu0 0.0
      %1607 = vmatpush1.msra.mxu0 0.0
      %1608 = vmatprep.subr.mxu0 0.0
      %1609 = vmatpush1.msra.mxu0 0.0
      %1610 = vmatprep.mubr.f32.mxu0 0.0
      %v1611 = vand.u32 %v476, 4294901760
      %v1612 = vsub.f32 %v476, %v1611
      %v1613 = vand.u32 %v1612, 4294901760
      %1614 = vmatmul.mubr.f32.gmra.mrb[0].mxu0 %v1613
      %v1615 = vpop.f32.mrb[0].mxu0
      %v1616 = vadd.f32 %v1524, %v1615
      %v1617 = vpop.f32.mrb[0].mxu0
      %v1618 = vadd.f32 %v1526, %v1617
      %1619 = vdwg.mxu0
      %v1620 = vand.u32 %v457, 4294901760
      %v1621 = vsub.f32 %v457, %v1620
      %v1622 = vand.u32 %v1621, 4294901760
      %1623 = vmatprep.subr.mxu0 %v1622
      %v1624 = vand.u32 %v456, 4294901760
      %v1625 = vsub.f32 %v456, %v1624
      %v1626 = vand.u32 %v1625, 4294901760
      %1627 = vmatpush1.msra.mxu0 %v1626
      %v1628 = vand.u32 %v459, 4294901760
      %v1629 = vsub.f32 %v459, %v1628
      %v1630 = vand.u32 %v1629, 4294901760
      %1631 = vmatprep.subr.mxu0 %v1630
      %v1632 = vand.u32 %v458, 4294901760
      %v1633 = vsub.f32 %v458, %v1632
      %v1634 = vand.u32 %v1633, 4294901760
      %1635 = vmatpush1.msra.mxu0 %v1634
      %v1636 = vand.u32 %v461, 4294901760
      %v1637 = vsub.f32 %v461, %v1636
      %v1638 = vand.u32 %v1637, 4294901760
      %1639 = vmatprep.subr.mxu0 %v1638
      %v1640 = vand.u32 %v460, 4294901760
      %v1641 = vsub.f32 %v460, %v1640
      %v1642 = vand.u32 %v1641, 4294901760
      %1643 = vmatpush1.msra.mxu0 %v1642
      %v1644 = vand.u32 %v463, 4294901760
      %v1645 = vsub.f32 %v463, %v1644
      %v1646 = vand.u32 %v1645, 4294901760
      %1647 = vmatprep.subr.mxu0 %v1646
      %v1648 = vand.u32 %v462, 4294901760
      %v1649 = vsub.f32 %v462, %v1648
      %v1650 = vand.u32 %v1649, 4294901760
      %1651 = vmatpush1.msra.mxu0 %v1650
      %v1652 = vand.u32 %v465, 4294901760
      %v1653 = vsub.f32 %v465, %v1652
      %v1654 = vand.u32 %v1653, 4294901760
      %1655 = vmatprep.subr.mxu0 %v1654
      %v1656 = vand.u32 %v464, 4294901760
      %v1657 = vsub.f32 %v464, %v1656
      %v1658 = vand.u32 %v1657, 4294901760
      %1659 = vmatpush1.msra.mxu0 %v1658
      %v1660 = vand.u32 %v467, 4294901760
      %v1661 = vsub.f32 %v467, %v1660
      %v1662 = vand.u32 %v1661, 4294901760
      %1663 = vmatprep.subr.mxu0 %v1662
      %v1664 = vand.u32 %v466, 4294901760
      %v1665 = vsub.f32 %v466, %v1664
      %v1666 = vand.u32 %v1665, 4294901760
      %1667 = vmatpush1.msra.mxu0 %v1666
      %v1668 = vand.u32 %v469, 4294901760
      %v1669 = vsub.f32 %v469, %v1668
      %v1670 = vand.u32 %v1669, 4294901760
      %1671 = vmatprep.subr.mxu0 %v1670
      %v1672 = vand.u32 %v468, 4294901760
      %v1673 = vsub.f32 %v468, %v1672
      %v1674 = vand.u32 %v1673, 4294901760
      %1675 = vmatpush1.msra.mxu0 %v1674
      %v1676 = vand.u32 %v471, 4294901760
      %v1677 = vsub.f32 %v471, %v1676
      %v1678 = vand.u32 %v1677, 4294901760
      %1679 = vmatprep.subr.mxu0 %v1678
      %v1680 = vand.u32 %v470, 4294901760
      %v1681 = vsub.f32 %v470, %v1680
      %v1682 = vand.u32 %v1681, 4294901760
      %1683 = vmatpush1.msra.mxu0 %v1682
      %v1684 = vand.u32 %v1161, 4294901760
      %v1685 = vsub.f32 %v1161, %v1684
      %v1686 = vand.u32 %v1685, 4294901760
      %1687 = vmatprep.subr.mxu0 %v1686
      %v1688 = vand.u32 %v1158, 4294901760
      %v1689 = vsub.f32 %v1158, %v1688
      %v1690 = vand.u32 %v1689, 4294901760
      %1691 = vmatpush1.msra.mxu0 %v1690
      %1692 = vmatprep.subr.mxu0 0.0
      %1693 = vmatpush1.msra.mxu0 0.0
      %1694 = vmatprep.subr.mxu0 0.0
      %1695 = vmatpush1.msra.mxu0 0.0
      %1696 = vmatprep.subr.mxu0 0.0
      %1697 = vmatpush1.msra.mxu0 0.0
      %1698 = vmatprep.subr.mxu0 0.0
      %1699 = vmatpush1.msra.mxu0 0.0
      %1700 = vmatprep.subr.mxu0 0.0
      %1701 = vmatpush1.msra.mxu0 0.0
      %1702 = vmatprep.subr.mxu0 0.0
      %1703 = vmatpush1.msra.mxu0 0.0
      %1704 = vmatprep.subr.mxu0 0.0
      %1705 = vmatpush1.msra.mxu0 0.0
      %1706 = vmatprep.subr.mxu0 0.0
      %1707 = vmatpush1.msra.mxu0 0.0
      %1708 = vmatprep.subr.mxu0 0.0
      %1709 = vmatpush1.msra.mxu0 0.0
      %1710 = vmatprep.subr.mxu0 0.0
      %1711 = vmatpush1.msra.mxu0 0.0
      %1712 = vmatprep.subr.mxu0 0.0
      %1713 = vmatpush1.msra.mxu0 0.0
      %1714 = vmatprep.subr.mxu0 0.0
      %1715 = vmatpush1.msra.mxu0 0.0
      %1716 = vmatprep.subr.mxu0 0.0
      %1717 = vmatpush1.msra.mxu0 0.0
      %1718 = vmatprep.subr.mxu0 0.0
      %1719 = vmatpush1.msra.mxu0 0.0
      %1720 = vmatprep.subr.mxu0 0.0
      %1721 = vmatpush1.msra.mxu0 0.0
      %1722 = vmatprep.subr.mxu0 0.0
      %1723 = vmatpush1.msra.mxu0 0.0
      %1724 = vmatprep.subr.mxu0 0.0
      %1725 = vmatpush1.msra.mxu0 0.0
      %1726 = vmatprep.subr.mxu0 0.0
      %1727 = vmatpush1.msra.mxu0 0.0
      %1728 = vmatprep.subr.mxu0 0.0
      %1729 = vmatpush1.msra.mxu0 0.0
      %1730 = vmatprep.subr.mxu0 0.0
      %1731 = vmatpush1.msra.mxu0 0.0
      %1732 = vmatprep.subr.mxu0 0.0
      %1733 = vmatpush1.msra.mxu0 0.0
      %1734 = vmatprep.subr.mxu0 0.0
      %1735 = vmatpush1.msra.mxu0 0.0
      %1736 = vmatprep.subr.mxu0 0.0
      %1737 = vmatpush1.msra.mxu0 0.0
      %1738 = vmatprep.mubr.f32.mxu0 0.0
      %v1739 = vand.u32 %v476, 4294901760
      %1740 = vmatmul.mubr.f32.gmra.mrb[0].mxu0 %v1739
      %v1741 = vpop.f32.mrb[0].mxu0
      %v1742 = vadd.f32 %v1616, %v1741
      %v1743 = vpop.f32.mrb[0].mxu0
      %v1744 = vadd.f32 %v1618, %v1743
      %1745 = vdwg.mxu0
      %v1746 = vand.u32 %v457, 4294901760
      %1747 = vmatprep.subr.mxu0 %v1746
      %v1748 = vand.u32 %v456, 4294901760
      %1749 = vmatpush1.msra.mxu0 %v1748
      %v1750 = vand.u32 %v459, 4294901760
      %1751 = vmatprep.subr.mxu0 %v1750
      %v1752 = vand.u32 %v458, 4294901760
      %1753 = vmatpush1.msra.mxu0 %v1752
      %v1754 = vand.u32 %v461, 4294901760
      %1755 = vmatprep.subr.mxu0 %v1754
      %v1756 = vand.u32 %v460, 4294901760
      %1757 = vmatpush1.msra.mxu0 %v1756
      %v1758 = vand.u32 %v463, 4294901760
      %1759 = vmatprep.subr.mxu0 %v1758
      %v1760 = vand.u32 %v462, 4294901760
      %1761 = vmatpush1.msra.mxu0 %v1760
      %v1762 = vand.u32 %v465, 4294901760
      %1763 = vmatprep.subr.mxu0 %v1762
      %v1764 = vand.u32 %v464, 4294901760
      %1765 = vmatpush1.msra.mxu0 %v1764
      %v1766 = vand.u32 %v467, 4294901760
      %1767 = vmatprep.subr.mxu0 %v1766
      %v1768 = vand.u32 %v466, 4294901760
      %1769 = vmatpush1.msra.mxu0 %v1768
      %v1770 = vand.u32 %v469, 4294901760
      %1771 = vmatprep.subr.mxu0 %v1770
      %v1772 = vand.u32 %v468, 4294901760
      %1773 = vmatpush1.msra.mxu0 %v1772
      %v1774 = vand.u32 %v471, 4294901760
      %1775 = vmatprep.subr.mxu0 %v1774
      %v1776 = vand.u32 %v470, 4294901760
      %1777 = vmatpush1.msra.mxu0 %v1776
      %v1778 = vand.u32 %v1161, 4294901760
      %1779 = vmatprep.subr.mxu0 %v1778
      %v1780 = vand.u32 %v1158, 4294901760
      %1781 = vmatpush1.msra.mxu0 %v1780
      %1782 = vmatprep.subr.mxu0 0.0
      %1783 = vmatpush1.msra.mxu0 0.0
      %1784 = vmatprep.subr.mxu0 0.0
      %1785 = vmatpush1.msra.mxu0 0.0
      %1786 = vmatprep.subr.mxu0 0.0
      %1787 = vmatpush1.msra.mxu0 0.0
      %1788 = vmatprep.subr.mxu0 0.0
      %1789 = vmatpush1.msra.mxu0 0.0
      %1790 = vmatprep.subr.mxu0 0.0
      %1791 = vmatpush1.msra.mxu0 0.0
      %1792 = vmatprep.subr.mxu0 0.0
      %1793 = vmatpush1.msra.mxu0 0.0
      %1794 = vmatprep.subr.mxu0 0.0
      %1795 = vmatpush1.msra.mxu0 0.0
      %1796 = vmatprep.subr.mxu0 0.0
      %1797 = vmatpush1.msra.mxu0 0.0
      %1798 = vmatprep.subr.mxu0 0.0
      %1799 = vmatpush1.msra.mxu0 0.0
      %1800 = vmatprep.subr.mxu0 0.0
      %1801 = vmatpush1.msra.mxu0 0.0
      %1802 = vmatprep.subr.mxu0 0.0
      %1803 = vmatpush1.msra.mxu0 0.0
      %1804 = vmatprep.subr.mxu0 0.0
      %1805 = vmatpush1.msra.mxu0 0.0
      %1806 = vmatprep.subr.mxu0 0.0
      %1807 = vmatpush1.msra.mxu0 0.0
      %1808 = vmatprep.subr.mxu0 0.0
      %1809 = vmatpush1.msra.mxu0 0.0
      %1810 = vmatprep.subr.mxu0 0.0
      %1811 = vmatpush1.msra.mxu0 0.0
      %1812 = vmatprep.subr.mxu0 0.0
      %1813 = vmatpush1.msra.mxu0 0.0
      %1814 = vmatprep.subr.mxu0 0.0
      %1815 = vmatpush1.msra.mxu0 0.0
      %1816 = vmatprep.subr.mxu0 0.0
      %1817 = vmatpush1.msra.mxu0 0.0
      %1818 = vmatprep.subr.mxu0 0.0
      %1819 = vmatpush1.msra.mxu0 0.0
      %1820 = vmatprep.subr.mxu0 0.0
      %1821 = vmatpush1.msra.mxu0 0.0
      %1822 = vmatprep.subr.mxu0 0.0
      %1823 = vmatpush1.msra.mxu0 0.0
      %1824 = vmatprep.subr.mxu0 0.0
      %1825 = vmatpush1.msra.mxu0 0.0
      %1826 = vmatprep.subr.mxu0 0.0
      %1827 = vmatpush1.msra.mxu0 0.0
      %1828 = vmatprep.mubr.f32.mxu0 0.0
      %v1829 = vand.u32 %v476, 4294901760
      %1830 = vmatmul.mubr.f32.gmra.mrb[0].mxu0 %v1829
      %v1831 = vpop.f32.mrb[0].mxu0
      %v1832 = vadd.f32 %v1742, %v1831
      %v1833 = vpop.f32.mrb[0].mxu0
      %v1834 = vadd.f32 %v1744, %v1833
      %1835 = vdwg.mxu0
      %v1836 = vlog2.pop %v1153
      %v1837 = vmul.f32 %v1836, 0.6931472
      %v1838 = vlog2.pop %v1155
      %v1839 = vmul.f32 %v1838, 0.6931472
      %v1840 = vadd.f32 %v350, %v1837
      %v1841 = vadd.f32 %v365, %v1839
      %v1842 = vsub.f32 %v1840, %v1832
      %v1843 = vsub.f32 %v1841, %v1834
      %v1846 = vcombine.low %v1842, %v1843
      %v1848 = vunpack.c.l.s4 1966171168
      %v1849 = vunpack.c.0.s8 %v1848
      %v1850 = vlaneseq
      %v1851 = vshrl.u32 %v1850, 7
      %v1852 = vsub.s32 %v1849, %v1851
      %v1853 = vrot.slane %v1846, %v1852
      %v1855 = vunpack.c.l.s4 1966171168
      %v1856 = vunpack.c.0.s8 %v1855
      %v1857 = vlaneseq
      %v1858 = vshrl.u32 %v1857, 7
      %v1859 = vsub.s32 %v1856, %v1858
      %v1860 = vrot.slane %v1853, %v1859
      %v1862 = vsel %vm334, %v1860, 0.0
      %v1863 = vld [vmem:[#allocation2] sm:$0x3]
      %v1864 = vadd.f32 %v1863, %v1862
      %v1865 = vlaneseq
      %vm1866 = vcmp.ge.s32.totalorder %v1865, 0
      %vm1867 = vcmp.lt.s32.totalorder %v1865, 256
      %vm1868 = vmand %vm1866, %vm1867
      %1869 = vst.msk [vmem:[#allocation2] sm:$0x3] %vm1868, %v1864
      %v1870 = vld [vmem:[#allocation3] sm:$0x3]
      %v1871 = vsel %vm334, 1, 0
      %v1872 = vcvt.s32.f32 %v1871
      %v1873 = vadd.f32 %v1870, %v1872
      %1874 = vst.msk [vmem:[#allocation3] sm:$0x3] %vm1868, %v1873
      // Predicated region
      $region33: #{d_ce_loss.1} parent=27 // pred_check
        %p1875 = pneg %p274
      $region34: #{d_ce_loss.1} parent=27 // pred_check_branch
        %1877 = sbr.rel (%p1875) target = $region36
      $region35: #{d_ce_loss.1} parent=27 // pred_region
        %v1878 = vld [vmem:[#allocation2] sm:$0x3]
        %v1880 = vlaneseq
        %v1881 = vshrl.u32 %v1880, 7
        %v1882 = vsub.s32 0, %v1881
        %v1883 = vrot.slane %v1878, %v1882
        %v1884 = vlaneseq
        %v1885 = vshrl.u32 %v1884, 7
        %v1886 = vsub.s32 1, %v1885
        %v1887 = vrot.slane %v1878, %v1886
        %vm1890 = vcmask 1040384
        %v1891 = vsel %vm1890, %v1883, 0.0
        %v1892 = vsel %vm1890, %v1887, 0.0
        %v1893 = vadd.f32 %v1891, %v1892
        %1894 = vadd.xlane.f32.xlu0 %v1893
        %v1895 = vpop.xlane.xlu0 %1894
        %v1896 = vrot.slane %v1895, 4
        %v1897 = vadd.f32 %v1895, %v1896
        %v1898 = vrot.slane %v1897, 2
        %v1899 = vadd.f32 %v1897, %v1898
        %v1900 = vrot.slane %v1899, 1
        %v1901 = vadd.f32 %v1899, %v1900
        %s1902 = vtos %v1901
        %v1903 = vstv %s1902
        %vm1904 = vcmask 0
        %1905 = vst.msk [vmem:[%s267] sm:$0x1] %vm1904, %v1903
        %v1906 = vld [vmem:[#allocation3] sm:$0x3]
        %v1908 = vlaneseq
        %v1909 = vshrl.u32 %v1908, 7
        %v1910 = vsub.s32 0, %v1909
        %v1911 = vrot.slane %v1906, %v1910
        %v1912 = vlaneseq
        %v1913 = vshrl.u32 %v1912, 7
        %v1914 = vsub.s32 1, %v1913
        %v1915 = vrot.slane %v1906, %v1914
        %v1918 = vsel %vm1890, %v1911, 0.0
        %v1919 = vsel %vm1890, %v1915, 0.0
        %v1920 = vadd.f32 %v1918, %v1919
        %1921 = vadd.xlane.f32.xlu0 %v1920
        %v1922 = vpop.xlane.xlu0 %1921
        %v1923 = vrot.slane %v1922, 4
        %v1924 = vadd.f32 %v1922, %v1923
        %v1925 = vrot.slane %v1924, 2
        %v1926 = vadd.f32 %v1924, %v1925
        %v1927 = vrot.slane %v1926, 1
        %v1928 = vadd.f32 %v1926, %v1927
        %s1929 = vtos %v1928
        %v1930 = vstv %s1929
        %1931 = vst.msk [vmem:[%s273] sm:$0x1] %vm1904, %v1930
      $region36: #{d_ce_loss.1} parent=27 // pred_fallthru
        _
      %p1932 = scmp.lt.s32.totalorder %s20, 1
      %s1933 = scalar_select %p1932, %s20, 1
      %p1934 = scmp.lt.s32.totalorder %s21, 0
      %s1935 = scalar_select %p1934, %s21, 0
      %s1936 = sadd.s32 %s1935, %s1933
      %s1937 = scalar_lea.vmem %s2, %s1936
      %p1938 = scmp.lt.s32.totalorder %s20, 1
      %s1939 = scalar_select %p1938, %s20, 1
      %p1940 = scmp.lt.s32.totalorder %s21, 0
      %s1941 = scalar_select %p1940, %s21, 0
      %s1942 = sadd.s32 %s1941, %s1939
      %s1943 = scalar_lea.vmem %s3, %s1942
      // Predicated region
      $region37: #{d_ce_loss.1} parent=27 // pred_check
        %p1944 = pneg %p114
      $region38: #{d_ce_loss.1} parent=27 // pred_check_branch
        %1946 = sbr.rel (%p1944) target = $region40
      $region39: #{d_ce_loss.1} parent=27 // pred_region
        _
      $region40: #{d_ce_loss.1} parent=27 // pred_fallthru
        _
      // Predicated region
      $region41: #{d_ce_loss.1} parent=27 // pred_check
        %p1947 = pneg %p142
      $region42: #{d_ce_loss.1} parent=27 // pred_check_branch
        %1949 = sbr.rel (%p1947) target = $region44
      $region43: #{d_ce_loss.1} parent=27 // pred_region
        _
      $region44: #{d_ce_loss.1} parent=27 // pred_fallthru
        _
    $region28: #{d_ce_loss.1} parent=5 // pred_fallthru
      _
    %p1950 = scmp.le.s32.totalorder 2, %s10
    // Predicated region
    $region45: #{d_ce_loss.1} parent=5 // pred_check
      %p1951 = pneg %p1950
    $region46: #{d_ce_loss.1} parent=5 // pred_check_branch
      %1953 = sbr.rel (%p1951) target = $region48
    $region47: #{d_ce_loss.1} parent=5 // pred_region
      %s1954 = ssub.s32 %s10, 2
      // Predicated region
      $region49: #{d_ce_loss.1} parent=47 // pred_check
        %p1955 = pneg %p120
      $region50: #{d_ce_loss.1} parent=47 // pred_check_branch
        %1957 = sbr.rel (%p1955) target = $region52
      $region51: #{d_ce_loss.1} parent=47 // pred_region
        %p1958 = scmp.lt.s32.totalorder %s23, 1
        %s1959 = scalar_select %p1958, %s23, 1
        %p1960 = scmp.lt.s32.totalorder %s24, 0
        %s1961 = scalar_select %p1960, %s24, 0
        %s1962 = sadd.s32 %s1961, %s1959
        %s1963 = scalar_lea.vmem %s2, %s1962
      $region52: #{d_ce_loss.1} parent=47 // pred_fallthru
        _
      // Predicated region
      $region53: #{d_ce_loss.1} parent=47 // pred_check
        %p1964 = pneg %p148
      $region54: #{d_ce_loss.1} parent=47 // pred_check_branch
        %1966 = sbr.rel (%p1964) target = $region56
      $region55: #{d_ce_loss.1} parent=47 // pred_region
        %p1967 = scmp.lt.s32.totalorder %s23, 1
        %s1968 = scalar_select %p1967, %s23, 1
        %p1969 = scmp.lt.s32.totalorder %s24, 0
        %s1970 = scalar_select %p1969, %s24, 0
        %s1971 = sadd.s32 %s1970, %s1968
        %s1972 = scalar_lea.vmem %s3, %s1971
      $region56: #{d_ce_loss.1} parent=47 // pred_fallthru
        _
    $region48: #{d_ce_loss.1} parent=5 // pred_fallthru
      _
  $region6: #{d_ce_loss.1} parent=0 // loop_footer
    %s14 = sadd.s32 1, %s10
  $region7: #{d_ce_loss.1} parent=0 // loop_footer_branch
    %9 = sbr.rel target = $region3
  $region8: #{d_ce_loss.1} parent=0 // loop_exit
    _

</llo_original>
